<compile_context>
chip_gen: v6e
topology: v6e:2x2x1
jax: 0.10.0
libtpu: 0.0.40
codegen_flags: <defaults>
</compile_context>

<pallas_src>
import jax
import jax.numpy as jnp
from jax.experimental import pallas as pl
from jax.experimental.pallas import tpu as pltpu

B = 8                    # batch (multiple of 8 -> (8,128) tiling constraint holds)
IN_DIM = 1 * 32 * 64     # 2048
H1 = 256
OUT = 100                # logical output width
OUT_PAD = 128            # lane-dense padded fc2 width used inside the kernel
NEG_BIG = -1e30          # finite "-inf" baked into the padded bias lanes


def _model_kernel(x_ref, w1_ref, b1_ref, w2_ref, b2_ref, o_ref):
    # fc1: cast activation to bf16 in-kernel, f32 MXU accumulation, f32 tanh.
    x_bf = x_ref[...].astype(jnp.bfloat16)
    h = jnp.dot(x_bf, w1_ref[...], preferred_element_type=jnp.float32)
    h = jnp.tanh(h + b1_ref[...])

    # fc2 (bf16 MXU inputs, f32 accumulation).  Padded columns of W2 are zero
    # and the corresponding bias lanes are -1e30, so no explicit mask needed.
    logits = jnp.dot(h.astype(jnp.bfloat16), w2_ref[...],
                     preferred_element_type=jnp.float32) + b2_ref[...]

    # Numerically stable log_softmax along dim=1 (f32).
    m = jnp.max(logits, axis=-1, keepdims=True)
    shifted = logits - m
    lse = jnp.log(jnp.sum(jnp.exp(shifted), axis=-1, keepdims=True))

    # Store only the 100 real lanes (single masked vst on one vreg).
    o_ref[...] = (shifted - lse)[:, :OUT].astype(o_ref.dtype)


def prepare_params(w1, b1, w2, b2):
    """One-time (init-path) weight conversion.  NOT part of the per-call path."""
    w1_bf = w1.astype(jnp.bfloat16)                              # 2048 x 256
    b1_2d = jnp.asarray(b1, jnp.float32).reshape(1, H1)
    w2_pad = jnp.pad(w2, ((0, 0), (0, OUT_PAD - OUT))).astype(jnp.bfloat16)
    b2_pad = jnp.pad(jnp.asarray(b2, jnp.float32).reshape(1, OUT),
                     ((0, 0), (0, OUT_PAD - OUT)),
                     constant_values=NEG_BIG)
    return w1_bf, b1_2d, w2_pad, b2_pad


def test_model_forward(x_nchw, w1_bf, b1_2d, w2_pad, b2_pad):
    """x_nchw: (B, 1, 32, 64) float32 -> (B, 100) log-probs (float32)."""
    b = x_nchw.shape[0]

    # torch .view(B, -1): row-major contiguous reshape (metadata-only), f32.
    x_flat = x_nchw.reshape(b, -1)

    cost = pl.CostEstimate(
        flops=2 * b * (IN_DIM * H1 + H1 * OUT_PAD),
        transcendentals=b * (H1 + OUT_PAD),          # tanh + exp
        bytes_accessed=(b * IN_DIM * 4               # x (f32)
                        + IN_DIM * H1 * 2            # W1 (bf16)
                        + H1 * 4                     # b1
                        + H1 * OUT_PAD * 2           # W2 (bf16)
                        + OUT_PAD * 4                # b2
                        + b * OUT * 4),              # output
    )

    return pl.pallas_call(
        _model_kernel,
        out_shape=jax.ShapeDtypeStruct((b, OUT), jnp.float32),
        grid_spec=pltpu.PrefetchScalarGridSpec(
            num_scalar_prefetch=0,
            grid=(1,),
            in_specs=[
                pl.BlockSpec((b, IN_DIM), lambda i: (0, 0)),
                pl.BlockSpec((IN_DIM, H1), lambda i: (0, 0)),
                pl.BlockSpec((1, H1), lambda i: (0, 0)),
                pl.BlockSpec((H1, OUT_PAD), lambda i: (0, 0)),
                pl.BlockSpec((1, OUT_PAD), lambda i: (0, 0)),
            ],
            out_specs=pl.BlockSpec((b, OUT), lambda i: (0, 0)),
        ),
        compiler_params=pltpu.CompilerParams(
            dimension_semantics=("arbitrary",),
        ),
        cost_estimate=cost,
    )(x_flat, w1_bf, b1_2d, w2_pad, b2_pad)


def _reference(x_nchw, w1, b1, w2, b2):
    x = x_nchw.reshape(x_nchw.shape[0], -1)
    h = jnp.tanh(x @ w1 + b1.reshape(1, -1))
    logits = h @ w2 + b2.reshape(1, -1)
    return jax.nn.log_softmax(logits, axis=1)


if __name__ == "__main__":
    key = jax.random.PRNGKey(0)
    kx, k1, k2, k3, k4 = jax.random.split(key, 5)

    # Deterministic synthetic parameters (shapes from the nn.Linear definitions).
    x = jax.random.normal(kx, (B, 1, 32, 64), dtype=jnp.float32)
    w1 = jax.random.normal(k1, (IN_DIM, H1), dtype=jnp.float32) * 0.02
    b1 = jax.random.normal(k2, (H1,), dtype=jnp.float32) * 0.02
    w2 = jax.random.normal(k3, (H1, OUT), dtype=jnp.float32) * 0.02
    b2 = jax.random.normal(k4, (OUT,), dtype=jnp.float32) * 0.02

    # One-time weight preparation (init path).
    params = prepare_params(w1, b1, w2, b2)
    params = jax.block_until_ready(params)

    fwd = jax.jit(test_model_forward)
    out = fwd(x, *params)
    out = jax.block_until_ready(out)

    ref = _reference(x, w1, b1, w2, b2)
    assert out.shape == (B, OUT)
    # Tolerance loosened vs. the f32 reference because matmul inputs are bf16
    # (accumulation stays f32, tanh / log_softmax in f32).
    assert jnp.allclose(out, ref, atol=2e-2, rtol=2e-2), "mismatch vs reference"

    print("KERNEL_OK")
</pallas_src>

<mosaic_0001>
module attributes {stable_mosaic.version = 11 : i64} {
  func.func @_model_kernel(%arg0: i32, %arg1: memref<8x2048xf32, #tpu.memory_space<vmem>>, %arg2: memref<2048x256xbf16, #tpu.memory_space<vmem>>, %arg3: memref<1x256xf32, #tpu.memory_space<vmem>>, %arg4: memref<256x128xbf16, #tpu.memory_space<vmem>>, %arg5: memref<1x128xf32, #tpu.memory_space<vmem>>, %arg6: memref<8x100xf32, #tpu.memory_space<vmem>>) attributes {dimension_semantics = [#tpu.dimension_semantics<arbitrary>], iteration_bounds = array<i64: 1>, scalar_prefetch = 0 : i64, scratch_operands = 0 : i64, tpu.core_type = #tpu.core_type<tc>, window_params = [{pipeline_mode = #tpu.pipeline_mode<synchronous>, transform_indices = @transform_0, window_bounds = array<i64: 8, 2048>}, {pipeline_mode = #tpu.pipeline_mode<synchronous>, transform_indices = @transform_1, window_bounds = array<i64: 2048, 256>}, {pipeline_mode = #tpu.pipeline_mode<synchronous>, transform_indices = @transform_2, window_bounds = array<i64: 1, 256>}, {pipeline_mode = #tpu.pipeline_mode<synchronous>, transform_indices = @transform_3, window_bounds = array<i64: 256, 128>}, {pipeline_mode = #tpu.pipeline_mode<synchronous>, transform_indices = @transform_4, window_bounds = array<i64: 1, 128>}, {pipeline_mode = #tpu.pipeline_mode<synchronous>, transform_indices = @transform_5, window_bounds = array<i64: 8, 100>}]} {
    %c0 = arith.constant 0 : index
    %c0_0 = arith.constant 0 : index
    %0 = vector.load %arg1[%c0, %c0_0] : memref<8x2048xf32, #tpu.memory_space<vmem>>, vector<8x2048xf32>
    %1 = arith.truncf %0 : vector<8x2048xf32> to vector<8x2048xbf16>
    %c0_1 = arith.constant 0 : index
    %c0_2 = arith.constant 0 : index
    %2 = vector.load %arg2[%c0_1, %c0_2] : memref<2048x256xbf16, #tpu.memory_space<vmem>>, vector<2048x256xbf16>
    %cst = arith.constant dense<0.000000e+00> : vector<8x256xf32>
    %3 = tpu.matmul %1, %2, %cst {dimension_numbers = #tpu.dot_dimension_numbers<[1], [0], [0], [1], [0, 0, 1, 1], [], []>} : vector<8x2048xbf16>, vector<2048x256xbf16>, vector<8x256xf32> -> vector<8x256xf32>
    %c0_3 = arith.constant 0 : index
    %c0_4 = arith.constant 0 : index
    %4 = vector.load %arg3[%c0_3, %c0_4] : memref<1x256xf32, #tpu.memory_space<vmem>>, vector<1x256xf32>
    %5 = vector.broadcast %4 : vector<1x256xf32> to vector<8x256xf32>
    %6 = arith.addf %3, %5 : vector<8x256xf32>
    %7 = math.tanh %6 : vector<8x256xf32>
    %8 = arith.truncf %7 : vector<8x256xf32> to vector<8x256xbf16>
    %c0_5 = arith.constant 0 : index
    %c0_6 = arith.constant 0 : index
    %9 = vector.load %arg4[%c0_5, %c0_6] : memref<256x128xbf16, #tpu.memory_space<vmem>>, vector<256x128xbf16>
    %cst_7 = arith.constant dense<0.000000e+00> : vector<8x128xf32>
    %10 = tpu.matmul %8, %9, %cst_7 {dimension_numbers = #tpu.dot_dimension_numbers<[1], [0], [0], [1], [0, 0, 1, 1], [], []>} : vector<8x256xbf16>, vector<256x128xbf16>, vector<8x128xf32> -> vector<8x128xf32>
    %c0_8 = arith.constant 0 : index
    %c0_9 = arith.constant 0 : index
    %11 = vector.load %arg5[%c0_8, %c0_9] : memref<1x128xf32, #tpu.memory_space<vmem>>, vector<1x128xf32>
    %12 = vector.broadcast %11 : vector<1x128xf32> to vector<8x128xf32>
    %13 = arith.addf %10, %12 : vector<8x128xf32>
    %cst_10 = arith.constant dense<0xFF800000> : vector<8xf32>
    %14 = vector.multi_reduction <maximumf>, %13, %cst_10 [1] : vector<8x128xf32> to vector<8xf32>
    %15 = vector.shape_cast %14 : vector<8xf32> to vector<8x1xf32>
    %16 = vector.broadcast %15 : vector<8x1xf32> to vector<8x128xf32>
    %17 = arith.subf %13, %16 : vector<8x128xf32>
    %18 = math.exp %17 : vector<8x128xf32>
    %cst_11 = arith.constant dense<0.000000e+00> : vector<8xf32>
    %19 = vector.multi_reduction <add>, %18, %cst_11 [1] : vector<8x128xf32> to vector<8xf32>
    %20 = vector.shape_cast %19 : vector<8xf32> to vector<8x1xf32>
    %21 = math.log %20 : vector<8x1xf32>
    %22 = vector.broadcast %21 : vector<8x1xf32> to vector<8x128xf32>
    %23 = arith.subf %17, %22 : vector<8x128xf32>
    %24 = vector.extract_strided_slice %23 {offsets = [0, 0], sizes = [8, 100], strides = [1, 1]} : vector<8x128xf32> to vector<8x100xf32>
    %c0_12 = arith.constant 0 : index
    %c0_13 = arith.constant 0 : index
    %25 = vector.load %arg6[%c0_12, %c0_13] : memref<8x100xf32, #tpu.memory_space<vmem>>, vector<8x100xf32>
    tpu.vector_store %arg6[%c0_12, %c0_13], %24 {strides = array<i32>} : memref<8x100xf32, #tpu.memory_space<vmem>>, vector<8x100xf32>,
    return
  }
  func.func @transform_0(%arg0: i32) -> (i32, i32) {
    %c0_i32 = arith.constant 0 : i32
    %c0_i32_0 = arith.constant 0 : i32
    %c0_i32_1 = arith.constant 0 : i32
    return %c0_i32, %c0_i32_0 : i32, i32
  }
  func.func @transform_1(%arg0: i32) -> (i32, i32) {
    %c0_i32 = arith.constant 0 : i32
    %c0_i32_0 = arith.constant 0 : i32
    %c0_i32_1 = arith.constant 0 : i32
    return %c0_i32, %c0_i32_0 : i32, i32
  }
  func.func @transform_2(%arg0: i32) -> (i32, i32) {
    %c0_i32 = arith.constant 0 : i32
    %c0_i32_0 = arith.constant 0 : i32
    %c0_i32_1 = arith.constant 0 : i32
    return %c0_i32, %c0_i32_0 : i32, i32
  }
  func.func @transform_3(%arg0: i32) -> (i32, i32) {
    %c0_i32 = arith.constant 0 : i32
    %c0_i32_0 = arith.constant 0 : i32
    %c0_i32_1 = arith.constant 0 : i32
    return %c0_i32, %c0_i32_0 : i32, i32
  }
  func.func @transform_4(%arg0: i32) -> (i32, i32) {
    %c0_i32 = arith.constant 0 : i32
    %c0_i32_0 = arith.constant 0 : i32
    %c0_i32_1 = arith.constant 0 : i32
    return %c0_i32, %c0_i32_0 : i32, i32
  }
  func.func @transform_5(%arg0: i32) -> (i32, i32) {
    %c0_i32 = arith.constant 0 : i32
    %c0_i32_0 = arith.constant 0 : i32
    %c0_i32_1 = arith.constant 0 : i32
    return %c0_i32, %c0_i32_0 : i32, i32
  }
}

</mosaic_0001>

<llo_original>
// kernel: test_model_forward.1
$region0: #{test_model_forward.1}
  #allocation0 [shape = 'u32[]', space=smem, size = 0x4, offset = 0x4, fixed_abs, tag = 'smem constant byte address 0x4 - core index']
  #allocation1 [shape = 'u32[144,128]{1,0:T(1,128)}', space=vmem, size = 0x12000, scoped, tag = 'internal scratch']
  %s0 = inlined_call_operand.vmem [shape: f32[8,2048], index: 0, kind: input, shape index: {}]
  %s1 = inlined_call_operand.hbm [shape: bf16[2048,256], index: 1, kind: input, shape index: {}]
  %s2 = inlined_call_operand.vmem [shape: f32[1,256], index: 2, kind: input, shape index: {}]
  %s3 = inlined_call_operand.vmem [shape: bf16[256,128], index: 3, kind: input, shape index: {}]
  %s4 = inlined_call_operand.vmem [shape: f32[1,128], index: 4, kind: input, shape index: {}]
  %s5 = inlined_call_operand.hbm [shape: f32[8,100], index: 5, kind: output, shape index: {}]
  %s6 = sld [smem:[#allocation0]]
  $region34: #{test_model_forward.1} parent=0
    _
  %s8 = ssub.s32 1, %s6
  %s9 = scalar_select 0, %s8, %s6
  $region1: #{test_model_forward.1} parent=0
    #allocation2 [shape = 'u8[1048576]{0}', space=vmem, size = 0x100000, scoped, tag = 'input window, operand 1, single buffered']
    #allocation3 [shape = 's32[1]{0}', space=sflag, size = 0x4, scoped, tag = 'scoped memory for test_model_forward.1']
    #allocation4 [shape = 's32[1]{0}', space=sflag, size = 0x4, scoped, tag = 'scoped memory for test_model_forward.1']
    #allocation5 [shape = 'u8[4096]{0}', space=vmem, size = 0x1000, scoped, tag = 'output window, operand 0, single buffered']
    %10 = vsyncpa [#allocation3], 0
    %11 = vsyncpa [#allocation4], 0
    // Predicated region
    $region2: #{test_model_forward.1} parent=1 // pred_check
      _
    $region3: #{test_model_forward.1} parent=1 // pred_check_branch
      %13 = sbr.rel (0) target = $region5
    $region4: #{test_model_forward.1} parent=1 // pred_region
      _
    $region5: #{test_model_forward.1} parent=1 // pred_fallthru
      _
    // Predicated region
    $region6: #{test_model_forward.1} parent=1 // pred_check
      _
    $region7: #{test_model_forward.1} parent=1 // pred_check_branch
      %15 = sbr.rel (0) target = $region9
    $region8: #{test_model_forward.1} parent=1 // pred_region
      %s17 = ssub.s32 32768, 32768
      %18 = vsyncadd [#allocation3], %s17
      %s19 = sshll.u32 [#allocation2], 4
      %s20 = int_to_ptr.vmem [resolvable:$true] %s19
      %25 = dma.hbm_to_vmem [thread:$0]  %s1, 32768, %s20, [#allocation3], 128, 128, 8
    $region9: #{test_model_forward.1} parent=1 // pred_fallthru
      _
    // Predicated region
    $region10: #{test_model_forward.1} parent=1 // pred_check
      _
    $region11: #{test_model_forward.1} parent=1 // pred_check_branch
      %27 = sbr.rel (0) target = $region13
    $region12: #{test_model_forward.1} parent=1 // pred_region
      _
    $region13: #{test_model_forward.1} parent=1 // pred_fallthru
      _
    // Predicated region
    $region14: #{test_model_forward.1} parent=1 // pred_check
      _
    $region15: #{test_model_forward.1} parent=1 // pred_check_branch
      %29 = sbr.rel (0) target = $region17
    $region16: #{test_model_forward.1} parent=1 // pred_region
      _
    $region17: #{test_model_forward.1} parent=1 // pred_fallthru
      _
    // Predicated region
    $region18: #{test_model_forward.1} parent=1 // pred_check
      _
    $region19: #{test_model_forward.1} parent=1 // pred_check_branch
      %31 = sbr.rel (0) target = $region21
    $region20: #{test_model_forward.1} parent=1 // pred_region
      _
    $region21: #{test_model_forward.1} parent=1 // pred_fallthru
      _
    // Predicated region
    $region22: #{test_model_forward.1} parent=1 // pred_check
      _
    $region23: #{test_model_forward.1} parent=1 // pred_check_branch
      %33 = sbr.rel (0) target = $region25
    $region24: #{test_model_forward.1} parent=1 // pred_region
      %34 = dma.done [#allocation3], 32768
    $region25: #{test_model_forward.1} parent=1 // pred_fallthru
      _
    %v36 = vld [vmem:[%s0] sm:$0xff]
    %v37 = vld [vmem:[%s0 + $0x8] sm:$0xff]
    %v38 = vld [vmem:[%s0 + $0x10] sm:$0xff]
    %v39 = vld [vmem:[%s0 + $0x18] sm:$0xff]
    %v40 = vld [vmem:[%s0 + $0x20] sm:$0xff]
    %v41 = vld [vmem:[%s0 + $0x28] sm:$0xff]
    %v42 = vld [vmem:[%s0 + $0x30] sm:$0xff]
    %v43 = vld [vmem:[%s0 + $0x38] sm:$0xff]
    %v44 = vld [vmem:[%s0 + $0x40] sm:$0xff]
    %v45 = vld [vmem:[%s0 + $0x48] sm:$0xff]
    %v46 = vld [vmem:[%s0 + $0x50] sm:$0xff]
    %v47 = vld [vmem:[%s0 + $0x58] sm:$0xff]
    %v48 = vld [vmem:[%s0 + $0x60] sm:$0xff]
    %v49 = vld [vmem:[%s0 + $0x68] sm:$0xff]
    %v50 = vld [vmem:[%s0 + $0x70] sm:$0xff]
    %v51 = vld [vmem:[%s0 + $0x78] sm:$0xff]
    %v52 = vpack.c.bf16 %v36, %v36
    %v53 = vpack.c.bf16 %v37, %v37
    %v54 = vpack.c.bf16 %v38, %v38
    %v55 = vpack.c.bf16 %v39, %v39
    %v56 = vpack.c.bf16 %v40, %v40
    %v57 = vpack.c.bf16 %v41, %v41
    %v58 = vpack.c.bf16 %v42, %v42
    %v59 = vpack.c.bf16 %v43, %v43
    %v60 = vpack.c.bf16 %v44, %v44
    %v61 = vpack.c.bf16 %v45, %v45
    %v62 = vpack.c.bf16 %v46, %v46
    %v63 = vpack.c.bf16 %v47, %v47
    %v64 = vpack.c.bf16 %v48, %v48
    %v65 = vpack.c.bf16 %v49, %v49
    %v66 = vpack.c.bf16 %v50, %v50
    %v67 = vpack.c.bf16 %v51, %v51
    %v68 = vld [vmem:[#allocation2] sm:$0xff]
    %v69 = vld [vmem:[#allocation2 + $0x8] sm:$0xff]
    %v70 = vld [vmem:[#allocation2 + $0x10] sm:$0xff]
    %v71 = vld [vmem:[#allocation2 + $0x18] sm:$0xff]
    %v72 = vld [vmem:[#allocation2 + $0x20] sm:$0xff]
    %v73 = vld [vmem:[#allocation2 + $0x28] sm:$0xff]
    %v74 = vld [vmem:[#allocation2 + $0x30] sm:$0xff]
    %v75 = vld [vmem:[#allocation2 + $0x38] sm:$0xff]
    %v76 = vld [vmem:[#allocation2 + $0x40] sm:$0xff]
    %v77 = vld [vmem:[#allocation2 + $0x48] sm:$0xff]
    %v78 = vld [vmem:[#allocation2 + $0x50] sm:$0xff]
    %v79 = vld [vmem:[#allocation2 + $0x58] sm:$0xff]
    %v80 = vld [vmem:[#allocation2 + $0x60] sm:$0xff]
    %v81 = vld [vmem:[#allocation2 + $0x68] sm:$0xff]
    %v82 = vld [vmem:[#allocation2 + $0x70] sm:$0xff]
    %v83 = vld [vmem:[#allocation2 + $0x78] sm:$0xff]
    %v84 = vld [vmem:[#allocation2 + $0x80] sm:$0xff]
    %v85 = vld [vmem:[#allocation2 + $0x88] sm:$0xff]
    %v86 = vld [vmem:[#allocation2 + $0x90] sm:$0xff]
    %v87 = vld [vmem:[#allocation2 + $0x98] sm:$0xff]
    %v88 = vld [vmem:[#allocation2 + $0xa0] sm:$0xff]
    %v89 = vld [vmem:[#allocation2 + $0xa8] sm:$0xff]
    %v90 = vld [vmem:[#allocation2 + $0xb0] sm:$0xff]
    %v91 = vld [vmem:[#allocation2 + $0xb8] sm:$0xff]
    %v92 = vld [vmem:[#allocation2 + $0xc0] sm:$0xff]
    %v93 = vld [vmem:[#allocation2 + $0xc8] sm:$0xff]
    %v94 = vld [vmem:[#allocation2 + $0xd0] sm:$0xff]
    %v95 = vld [vmem:[#allocation2 + $0xd8] sm:$0xff]
    %v96 = vld [vmem:[#allocation2 + $0xe0] sm:$0xff]
    %v97 = vld [vmem:[#allocation2 + $0xe8] sm:$0xff]
    %v98 = vld [vmem:[#allocation2 + $0xf0] sm:$0xff]
    %v99 = vld [vmem:[#allocation2 + $0xf8] sm:$0xff]
    %v100 = vld [vmem:[#allocation2 + $0x100] sm:$0xff]
    %v101 = vld [vmem:[#allocation2 + $0x108] sm:$0xff]
    %v102 = vld [vmem:[#allocation2 + $0x110] sm:$0xff]
    %v103 = vld [vmem:[#allocation2 + $0x118] sm:$0xff]
    %v104 = vld [vmem:[#allocation2 + $0x120] sm:$0xff]
    %v105 = vld [vmem:[#allocation2 + $0x128] sm:$0xff]
    %v106 = vld [vmem:[#allocation2 + $0x130] sm:$0xff]
    %v107 = vld [vmem:[#allocation2 + $0x138] sm:$0xff]
    %v108 = vld [vmem:[#allocation2 + $0x140] sm:$0xff]
    %v109 = vld [vmem:[#allocation2 + $0x148] sm:$0xff]
    %v110 = vld [vmem:[#allocation2 + $0x150] sm:$0xff]
    %v111 = vld [vmem:[#allocation2 + $0x158] sm:$0xff]
    %v112 = vld [vmem:[#allocation2 + $0x160] sm:$0xff]
    %v113 = vld [vmem:[#allocation2 + $0x168] sm:$0xff]
    %v114 = vld [vmem:[#allocation2 + $0x170] sm:$0xff]
    %v115 = vld [vmem:[#allocation2 + $0x178] sm:$0xff]
    %v116 = vld [vmem:[#allocation2 + $0x180] sm:$0xff]
    %v117 = vld [vmem:[#allocation2 + $0x188] sm:$0xff]
    %v118 = vld [vmem:[#allocation2 + $0x190] sm:$0xff]
    %v119 = vld [vmem:[#allocation2 + $0x198] sm:$0xff]
    %v120 = vld [vmem:[#allocation2 + $0x1a0] sm:$0xff]
    %v121 = vld [vmem:[#allocation2 + $0x1a8] sm:$0xff]
    %v122 = vld [vmem:[#allocation2 + $0x1b0] sm:$0xff]
    %v123 = vld [vmem:[#allocation2 + $0x1b8] sm:$0xff]
    %v124 = vld [vmem:[#allocation2 + $0x1c0] sm:$0xff]
    %v125 = vld [vmem:[#allocation2 + $0x1c8] sm:$0xff]
    %v126 = vld [vmem:[#allocation2 + $0x1d0] sm:$0xff]
    %v127 = vld [vmem:[#allocation2 + $0x1d8] sm:$0xff]
    %v128 = vld [vmem:[#allocation2 + $0x1e0] sm:$0xff]
    %v129 = vld [vmem:[#allocation2 + $0x1e8] sm:$0xff]
    %v130 = vld [vmem:[#allocation2 + $0x1f0] sm:$0xff]
    %v131 = vld [vmem:[#allocation2 + $0x1f8] sm:$0xff]
    %v132 = vld [vmem:[#allocation2 + $0x200] sm:$0xff]
    %v133 = vld [vmem:[#allocation2 + $0x208] sm:$0xff]
    %v134 = vld [vmem:[#allocation2 + $0x210] sm:$0xff]
    %v135 = vld [vmem:[#allocation2 + $0x218] sm:$0xff]
    %v136 = vld [vmem:[#allocation2 + $0x220] sm:$0xff]
    %v137 = vld [vmem:[#allocation2 + $0x228] sm:$0xff]
    %v138 = vld [vmem:[#allocation2 + $0x230] sm:$0xff]
    %v139 = vld [vmem:[#allocation2 + $0x238] sm:$0xff]
    %v140 = vld [vmem:[#allocation2 + $0x240] sm:$0xff]
    %v141 = vld [vmem:[#allocation2 + $0x248] sm:$0xff]
    %v142 = vld [vmem:[#allocation2 + $0x250] sm:$0xff]
    %v143 = vld [vmem:[#allocation2 + $0x258] sm:$0xff]
    %v144 = vld [vmem:[#allocation2 + $0x260] sm:$0xff]
    %v145 = vld [vmem:[#allocation2 + $0x268] sm:$0xff]
    %v146 = vld [vmem:[#allocation2 + $0x270] sm:$0xff]
    %v147 = vld [vmem:[#allocation2 + $0x278] sm:$0xff]
    %v148 = vld [vmem:[#allocation2 + $0x280] sm:$0xff]
    %v149 = vld [vmem:[#allocation2 + $0x288] sm:$0xff]
    %v150 = vld [vmem:[#allocation2 + $0x290] sm:$0xff]
    %v151 = vld [vmem:[#allocation2 + $0x298] sm:$0xff]
    %v152 = vld [vmem:[#allocation2 + $0x2a0] sm:$0xff]
    %v153 = vld [vmem:[#allocation2 + $0x2a8] sm:$0xff]
    %v154 = vld [vmem:[#allocation2 + $0x2b0] sm:$0xff]
    %v155 = vld [vmem:[#allocation2 + $0x2b8] sm:$0xff]
    %v156 = vld [vmem:[#allocation2 + $0x2c0] sm:$0xff]
    %v157 = vld [vmem:[#allocation2 + $0x2c8] sm:$0xff]
    %v158 = vld [vmem:[#allocation2 + $0x2d0] sm:$0xff]
    %v159 = vld [vmem:[#allocation2 + $0x2d8] sm:$0xff]
    %v160 = vld [vmem:[#allocation2 + $0x2e0] sm:$0xff]
    %v161 = vld [vmem:[#allocation2 + $0x2e8] sm:$0xff]
    %v162 = vld [vmem:[#allocation2 + $0x2f0] sm:$0xff]
    %v163 = vld [vmem:[#allocation2 + $0x2f8] sm:$0xff]
    %v164 = vld [vmem:[#allocation2 + $0x300] sm:$0xff]
    %v165 = vld [vmem:[#allocation2 + $0x308] sm:$0xff]
    %v166 = vld [vmem:[#allocation2 + $0x310] sm:$0xff]
    %v167 = vld [vmem:[#allocation2 + $0x318] sm:$0xff]
    %v168 = vld [vmem:[#allocation2 + $0x320] sm:$0xff]
    %v169 = vld [vmem:[#allocation2 + $0x328] sm:$0xff]
    %v170 = vld [vmem:[#allocation2 + $0x330] sm:$0xff]
    %v171 = vld [vmem:[#allocation2 + $0x338] sm:$0xff]
    %v172 = vld [vmem:[#allocation2 + $0x340] sm:$0xff]
    %v173 = vld [vmem:[#allocation2 + $0x348] sm:$0xff]
    %v174 = vld [vmem:[#allocation2 + $0x350] sm:$0xff]
    %v175 = vld [vmem:[#allocation2 + $0x358] sm:$0xff]
    %v176 = vld [vmem:[#allocation2 + $0x360] sm:$0xff]
    %v177 = vld [vmem:[#allocation2 + $0x368] sm:$0xff]
    %v178 = vld [vmem:[#allocation2 + $0x370] sm:$0xff]
    %v179 = vld [vmem:[#allocation2 + $0x378] sm:$0xff]
    %v180 = vld [vmem:[#allocation2 + $0x380] sm:$0xff]
    %v181 = vld [vmem:[#allocation2 + $0x388] sm:$0xff]
    %v182 = vld [vmem:[#allocation2 + $0x390] sm:$0xff]
    %v183 = vld [vmem:[#allocation2 + $0x398] sm:$0xff]
    %v184 = vld [vmem:[#allocation2 + $0x3a0] sm:$0xff]
    %v185 = vld [vmem:[#allocation2 + $0x3a8] sm:$0xff]
    %v186 = vld [vmem:[#allocation2 + $0x3b0] sm:$0xff]
    %v187 = vld [vmem:[#allocation2 + $0x3b8] sm:$0xff]
    %v188 = vld [vmem:[#allocation2 + $0x3c0] sm:$0xff]
    %v189 = vld [vmem:[#allocation2 + $0x3c8] sm:$0xff]
    %v190 = vld [vmem:[#allocation2 + $0x3d0] sm:$0xff]
    %v191 = vld [vmem:[#allocation2 + $0x3d8] sm:$0xff]
    %v192 = vld [vmem:[#allocation2 + $0x3e0] sm:$0xff]
    %v193 = vld [vmem:[#allocation2 + $0x3e8] sm:$0xff]
    %v194 = vld [vmem:[#allocation2 + $0x3f0] sm:$0xff]
    %v195 = vld [vmem:[#allocation2 + $0x3f8] sm:$0xff]
    %v196 = vld [vmem:[#allocation2 + $0x400] sm:$0xff]
    %v197 = vld [vmem:[#allocation2 + $0x408] sm:$0xff]
    %v198 = vld [vmem:[#allocation2 + $0x410] sm:$0xff]
    %v199 = vld [vmem:[#allocation2 + $0x418] sm:$0xff]
    %v200 = vld [vmem:[#allocation2 + $0x420] sm:$0xff]
    %v201 = vld [vmem:[#allocation2 + $0x428] sm:$0xff]
    %v202 = vld [vmem:[#allocation2 + $0x430] sm:$0xff]
    %v203 = vld [vmem:[#allocation2 + $0x438] sm:$0xff]
    %v204 = vld [vmem:[#allocation2 + $0x440] sm:$0xff]
    %v205 = vld [vmem:[#allocation2 + $0x448] sm:$0xff]
    %v206 = vld [vmem:[#allocation2 + $0x450] sm:$0xff]
    %v207 = vld [vmem:[#allocation2 + $0x458] sm:$0xff]
    %v208 = vld [vmem:[#allocation2 + $0x460] sm:$0xff]
    %v209 = vld [vmem:[#allocation2 + $0x468] sm:$0xff]
    %v210 = vld [vmem:[#allocation2 + $0x470] sm:$0xff]
    %v211 = vld [vmem:[#allocation2 + $0x478] sm:$0xff]
    %v212 = vld [vmem:[#allocation2 + $0x480] sm:$0xff]
    %v213 = vld [vmem:[#allocation2 + $0x488] sm:$0xff]
    %v214 = vld [vmem:[#allocation2 + $0x490] sm:$0xff]
    %v215 = vld [vmem:[#allocation2 + $0x498] sm:$0xff]
    %v216 = vld [vmem:[#allocation2 + $0x4a0] sm:$0xff]
    %v217 = vld [vmem:[#allocation2 + $0x4a8] sm:$0xff]
    %v218 = vld [vmem:[#allocation2 + $0x4b0] sm:$0xff]
    %v219 = vld [vmem:[#allocation2 + $0x4b8] sm:$0xff]
    %v220 = vld [vmem:[#allocation2 + $0x4c0] sm:$0xff]
    %v221 = vld [vmem:[#allocation2 + $0x4c8] sm:$0xff]
    %v222 = vld [vmem:[#allocation2 + $0x4d0] sm:$0xff]
    %v223 = vld [vmem:[#allocation2 + $0x4d8] sm:$0xff]
    %v224 = vld [vmem:[#allocation2 + $0x4e0] sm:$0xff]
    %v225 = vld [vmem:[#allocation2 + $0x4e8] sm:$0xff]
    %v226 = vld [vmem:[#allocation2 + $0x4f0] sm:$0xff]
    %v227 = vld [vmem:[#allocation2 + $0x4f8] sm:$0xff]
    %v228 = vld [vmem:[#allocation2 + $0x500] sm:$0xff]
    %v229 = vld [vmem:[#allocation2 + $0x508] sm:$0xff]
    %v230 = vld [vmem:[#allocation2 + $0x510] sm:$0xff]
    %v231 = vld [vmem:[#allocation2 + $0x518] sm:$0xff]
    %v232 = vld [vmem:[#allocation2 + $0x520] sm:$0xff]
    %v233 = vld [vmem:[#allocation2 + $0x528] sm:$0xff]
    %v234 = vld [vmem:[#allocation2 + $0x530] sm:$0xff]
    %v235 = vld [vmem:[#allocation2 + $0x538] sm:$0xff]
    %v236 = vld [vmem:[#allocation2 + $0x540] sm:$0xff]
    %v237 = vld [vmem:[#allocation2 + $0x548] sm:$0xff]
    %v238 = vld [vmem:[#allocation2 + $0x550] sm:$0xff]
    %v239 = vld [vmem:[#allocation2 + $0x558] sm:$0xff]
    %v240 = vld [vmem:[#allocation2 + $0x560] sm:$0xff]
    %v241 = vld [vmem:[#allocation2 + $0x568] sm:$0xff]
    %v242 = vld [vmem:[#allocation2 + $0x570] sm:$0xff]
    %v243 = vld [vmem:[#allocation2 + $0x578] sm:$0xff]
    %v244 = vld [vmem:[#allocation2 + $0x580] sm:$0xff]
    %v245 = vld [vmem:[#allocation2 + $0x588] sm:$0xff]
    %v246 = vld [vmem:[#allocation2 + $0x590] sm:$0xff]
    %v247 = vld [vmem:[#allocation2 + $0x598] sm:$0xff]
    %v248 = vld [vmem:[#allocation2 + $0x5a0] sm:$0xff]
    %v249 = vld [vmem:[#allocation2 + $0x5a8] sm:$0xff]
    %v250 = vld [vmem:[#allocation2 + $0x5b0] sm:$0xff]
    %v251 = vld [vmem:[#allocation2 + $0x5b8] sm:$0xff]
    %v252 = vld [vmem:[#allocation2 + $0x5c0] sm:$0xff]
    %v253 = vld [vmem:[#allocation2 + $0x5c8] sm:$0xff]
    %v254 = vld [vmem:[#allocation2 + $0x5d0] sm:$0xff]
    %v255 = vld [vmem:[#allocation2 + $0x5d8] sm:$0xff]
    %v256 = vld [vmem:[#allocation2 + $0x5e0] sm:$0xff]
    %v257 = vld [vmem:[#allocation2 + $0x5e8] sm:$0xff]
    %v258 = vld [vmem:[#allocation2 + $0x5f0] sm:$0xff]
    %v259 = vld [vmem:[#allocation2 + $0x5f8] sm:$0xff]
    %v260 = vld [vmem:[#allocation2 + $0x600] sm:$0xff]
    %v261 = vld [vmem:[#allocation2 + $0x608] sm:$0xff]
    %v262 = vld [vmem:[#allocation2 + $0x610] sm:$0xff]
    %v263 = vld [vmem:[#allocation2 + $0x618] sm:$0xff]
    %v264 = vld [vmem:[#allocation2 + $0x620] sm:$0xff]
    %v265 = vld [vmem:[#allocation2 + $0x628] sm:$0xff]
    %v266 = vld [vmem:[#allocation2 + $0x630] sm:$0xff]
    %v267 = vld [vmem:[#allocation2 + $0x638] sm:$0xff]
    %v268 = vld [vmem:[#allocation2 + $0x640] sm:$0xff]
    %v269 = vld [vmem:[#allocation2 + $0x648] sm:$0xff]
    %v270 = vld [vmem:[#allocation2 + $0x650] sm:$0xff]
    %v271 = vld [vmem:[#allocation2 + $0x658] sm:$0xff]
    %v272 = vld [vmem:[#allocation2 + $0x660] sm:$0xff]
    %v273 = vld [vmem:[#allocation2 + $0x668] sm:$0xff]
    %v274 = vld [vmem:[#allocation2 + $0x670] sm:$0xff]
    %v275 = vld [vmem:[#allocation2 + $0x678] sm:$0xff]
    %v276 = vld [vmem:[#allocation2 + $0x680] sm:$0xff]
    %v277 = vld [vmem:[#allocation2 + $0x688] sm:$0xff]
    %v278 = vld [vmem:[#allocation2 + $0x690] sm:$0xff]
    %v279 = vld [vmem:[#allocation2 + $0x698] sm:$0xff]
    %v280 = vld [vmem:[#allocation2 + $0x6a0] sm:$0xff]
    %v281 = vld [vmem:[#allocation2 + $0x6a8] sm:$0xff]
    %v282 = vld [vmem:[#allocation2 + $0x6b0] sm:$0xff]
    %v283 = vld [vmem:[#allocation2 + $0x6b8] sm:$0xff]
    %v284 = vld [vmem:[#allocation2 + $0x6c0] sm:$0xff]
    %v285 = vld [vmem:[#allocation2 + $0x6c8] sm:$0xff]
    %v286 = vld [vmem:[#allocation2 + $0x6d0] sm:$0xff]
    %v287 = vld [vmem:[#allocation2 + $0x6d8] sm:$0xff]
    %v288 = vld [vmem:[#allocation2 + $0x6e0] sm:$0xff]
    %v289 = vld [vmem:[#allocation2 + $0x6e8] sm:$0xff]
    %v290 = vld [vmem:[#allocation2 + $0x6f0] sm:$0xff]
    %v291 = vld [vmem:[#allocation2 + $0x6f8] sm:$0xff]
    %v292 = vld [vmem:[#allocation2 + $0x700] sm:$0xff]
    %v293 = vld [vmem:[#allocation2 + $0x708] sm:$0xff]
    %v294 = vld [vmem:[#allocation2 + $0x710] sm:$0xff]
    %v295 = vld [vmem:[#allocation2 + $0x718] sm:$0xff]
    %v296 = vld [vmem:[#allocation2 + $0x720] sm:$0xff]
    %v297 = vld [vmem:[#allocation2 + $0x728] sm:$0xff]
    %v298 = vld [vmem:[#allocation2 + $0x730] sm:$0xff]
    %v299 = vld [vmem:[#allocation2 + $0x738] sm:$0xff]
    %v300 = vld [vmem:[#allocation2 + $0x740] sm:$0xff]
    %v301 = vld [vmem:[#allocation2 + $0x748] sm:$0xff]
    %v302 = vld [vmem:[#allocation2 + $0x750] sm:$0xff]
    %v303 = vld [vmem:[#allocation2 + $0x758] sm:$0xff]
    %v304 = vld [vmem:[#allocation2 + $0x760] sm:$0xff]
    %v305 = vld [vmem:[#allocation2 + $0x768] sm:$0xff]
    %v306 = vld [vmem:[#allocation2 + $0x770] sm:$0xff]
    %v307 = vld [vmem:[#allocation2 + $0x778] sm:$0xff]
    %v308 = vld [vmem:[#allocation2 + $0x780] sm:$0xff]
    %v309 = vld [vmem:[#allocation2 + $0x788] sm:$0xff]
    %v310 = vld [vmem:[#allocation2 + $0x790] sm:$0xff]
    %v311 = vld [vmem:[#allocation2 + $0x798] sm:$0xff]
    %v312 = vld [vmem:[#allocation2 + $0x7a0] sm:$0xff]
    %v313 = vld [vmem:[#allocation2 + $0x7a8] sm:$0xff]
    %v314 = vld [vmem:[#allocation2 + $0x7b0] sm:$0xff]
    %v315 = vld [vmem:[#allocation2 + $0x7b8] sm:$0xff]
    %v316 = vld [vmem:[#allocation2 + $0x7c0] sm:$0xff]
    %v317 = vld [vmem:[#allocation2 + $0x7c8] sm:$0xff]
    %v318 = vld [vmem:[#allocation2 + $0x7d0] sm:$0xff]
    %v319 = vld [vmem:[#allocation2 + $0x7d8] sm:$0xff]
    %v320 = vld [vmem:[#allocation2 + $0x7e0] sm:$0xff]
    %v321 = vld [vmem:[#allocation2 + $0x7e8] sm:$0xff]
    %v322 = vld [vmem:[#allocation2 + $0x7f0] sm:$0xff]
    %v323 = vld [vmem:[#allocation2 + $0x7f8] sm:$0xff]
    %v324 = vld [vmem:[%s2] sm:$0x3]
    %v326 = vlaneseq
    %v327 = vshrl.u32 %v326, 7
    %v328 = vsub.s32 0, %v327
    %v329 = vrot.slane %v324, %v328
    %v330 = vlaneseq
    %v331 = vshrl.u32 %v330, 7
    %v332 = vsub.s32 1, %v331
    %v333 = vrot.slane %v324, %v332
    %v592 = vunpack.c.l.b16 %v68
    %v593 = vunpack.c.h.b16 %v68
    %v594 = vunpack.c.l.b16 %v69
    %v595 = vunpack.c.h.b16 %v69
    %v596 = vunpack.c.l.b16 %v70
    %v597 = vunpack.c.h.b16 %v70
    %v598 = vunpack.c.l.b16 %v71
    %v599 = vunpack.c.h.b16 %v71
    %v600 = vunpack.c.l.b16 %v72
    %v601 = vunpack.c.h.b16 %v72
    %v602 = vunpack.c.l.b16 %v73
    %v603 = vunpack.c.h.b16 %v73
    %v604 = vunpack.c.l.b16 %v74
    %v605 = vunpack.c.h.b16 %v74
    %v606 = vunpack.c.l.b16 %v75
    %v607 = vunpack.c.h.b16 %v75
    %v608 = vunpack.c.l.b16 %v76
    %v609 = vunpack.c.h.b16 %v76
    %v610 = vunpack.c.l.b16 %v77
    %v611 = vunpack.c.h.b16 %v77
    %v612 = vunpack.c.l.b16 %v78
    %v613 = vunpack.c.h.b16 %v78
    %v614 = vunpack.c.l.b16 %v79
    %v615 = vunpack.c.h.b16 %v79
    %v616 = vunpack.c.l.b16 %v80
    %v617 = vunpack.c.h.b16 %v80
    %v618 = vunpack.c.l.b16 %v81
    %v619 = vunpack.c.h.b16 %v81
    %v620 = vunpack.c.l.b16 %v82
    %v621 = vunpack.c.h.b16 %v82
    %v622 = vunpack.c.l.b16 %v83
    %v623 = vunpack.c.h.b16 %v83
    %v624 = vunpack.c.l.b16 %v84
    %v625 = vunpack.c.h.b16 %v84
    %v626 = vunpack.c.l.b16 %v85
    %v627 = vunpack.c.h.b16 %v85
    %v628 = vunpack.c.l.b16 %v86
    %v629 = vunpack.c.h.b16 %v86
    %v630 = vunpack.c.l.b16 %v87
    %v631 = vunpack.c.h.b16 %v87
    %v632 = vunpack.c.l.b16 %v88
    %v633 = vunpack.c.h.b16 %v88
    %v634 = vunpack.c.l.b16 %v89
    %v635 = vunpack.c.h.b16 %v89
    %v636 = vunpack.c.l.b16 %v90
    %v637 = vunpack.c.h.b16 %v90
    %v638 = vunpack.c.l.b16 %v91
    %v639 = vunpack.c.h.b16 %v91
    %v640 = vunpack.c.l.b16 %v92
    %v641 = vunpack.c.h.b16 %v92
    %v642 = vunpack.c.l.b16 %v93
    %v643 = vunpack.c.h.b16 %v93
    %v644 = vunpack.c.l.b16 %v94
    %v645 = vunpack.c.h.b16 %v94
    %v646 = vunpack.c.l.b16 %v95
    %v647 = vunpack.c.h.b16 %v95
    %v648 = vunpack.c.l.b16 %v96
    %v649 = vunpack.c.h.b16 %v96
    %v650 = vunpack.c.l.b16 %v97
    %v651 = vunpack.c.h.b16 %v97
    %v652 = vunpack.c.l.b16 %v98
    %v653 = vunpack.c.h.b16 %v98
    %v654 = vunpack.c.l.b16 %v99
    %v655 = vunpack.c.h.b16 %v99
    %v656 = vunpack.c.l.b16 %v100
    %v657 = vunpack.c.h.b16 %v100
    %v658 = vunpack.c.l.b16 %v101
    %v659 = vunpack.c.h.b16 %v101
    %v660 = vunpack.c.l.b16 %v102
    %v661 = vunpack.c.h.b16 %v102
    %v662 = vunpack.c.l.b16 %v103
    %v663 = vunpack.c.h.b16 %v103
    %v664 = vunpack.c.l.b16 %v104
    %v665 = vunpack.c.h.b16 %v104
    %v666 = vunpack.c.l.b16 %v105
    %v667 = vunpack.c.h.b16 %v105
    %v668 = vunpack.c.l.b16 %v106
    %v669 = vunpack.c.h.b16 %v106
    %v670 = vunpack.c.l.b16 %v107
    %v671 = vunpack.c.h.b16 %v107
    %v672 = vunpack.c.l.b16 %v108
    %v673 = vunpack.c.h.b16 %v108
    %v674 = vunpack.c.l.b16 %v109
    %v675 = vunpack.c.h.b16 %v109
    %v676 = vunpack.c.l.b16 %v110
    %v677 = vunpack.c.h.b16 %v110
    %v678 = vunpack.c.l.b16 %v111
    %v679 = vunpack.c.h.b16 %v111
    %v680 = vunpack.c.l.b16 %v112
    %v681 = vunpack.c.h.b16 %v112
    %v682 = vunpack.c.l.b16 %v113
    %v683 = vunpack.c.h.b16 %v113
    %v684 = vunpack.c.l.b16 %v114
    %v685 = vunpack.c.h.b16 %v114
    %v686 = vunpack.c.l.b16 %v115
    %v687 = vunpack.c.h.b16 %v115
    %v688 = vunpack.c.l.b16 %v116
    %v689 = vunpack.c.h.b16 %v116
    %v690 = vunpack.c.l.b16 %v117
    %v691 = vunpack.c.h.b16 %v117
    %v692 = vunpack.c.l.b16 %v118
    %v693 = vunpack.c.h.b16 %v118
    %v694 = vunpack.c.l.b16 %v119
    %v695 = vunpack.c.h.b16 %v119
    %v696 = vunpack.c.l.b16 %v120
    %v697 = vunpack.c.h.b16 %v120
    %v698 = vunpack.c.l.b16 %v121
    %v699 = vunpack.c.h.b16 %v121
    %v700 = vunpack.c.l.b16 %v122
    %v701 = vunpack.c.h.b16 %v122
    %v702 = vunpack.c.l.b16 %v123
    %v703 = vunpack.c.h.b16 %v123
    %v704 = vunpack.c.l.b16 %v124
    %v705 = vunpack.c.h.b16 %v124
    %v706 = vunpack.c.l.b16 %v125
    %v707 = vunpack.c.h.b16 %v125
    %v708 = vunpack.c.l.b16 %v126
    %v709 = vunpack.c.h.b16 %v126
    %v710 = vunpack.c.l.b16 %v127
    %v711 = vunpack.c.h.b16 %v127
    %v712 = vunpack.c.l.b16 %v128
    %v713 = vunpack.c.h.b16 %v128
    %v714 = vunpack.c.l.b16 %v129
    %v715 = vunpack.c.h.b16 %v129
    %v716 = vunpack.c.l.b16 %v130
    %v717 = vunpack.c.h.b16 %v130
    %v718 = vunpack.c.l.b16 %v131
    %v719 = vunpack.c.h.b16 %v131
    %v720 = vunpack.c.l.b16 %v132
    %v721 = vunpack.c.h.b16 %v132
    %v722 = vunpack.c.l.b16 %v133
    %v723 = vunpack.c.h.b16 %v133
    %v724 = vunpack.c.l.b16 %v134
    %v725 = vunpack.c.h.b16 %v134
    %v726 = vunpack.c.l.b16 %v135
    %v727 = vunpack.c.h.b16 %v135
    %v728 = vunpack.c.l.b16 %v136
    %v729 = vunpack.c.h.b16 %v136
    %v730 = vunpack.c.l.b16 %v137
    %v731 = vunpack.c.h.b16 %v137
    %v732 = vunpack.c.l.b16 %v138
    %v733 = vunpack.c.h.b16 %v138
    %v734 = vunpack.c.l.b16 %v139
    %v735 = vunpack.c.h.b16 %v139
    %v736 = vunpack.c.l.b16 %v140
    %v737 = vunpack.c.h.b16 %v140
    %v738 = vunpack.c.l.b16 %v141
    %v739 = vunpack.c.h.b16 %v141
    %v740 = vunpack.c.l.b16 %v142
    %v741 = vunpack.c.h.b16 %v142
    %v742 = vunpack.c.l.b16 %v143
    %v743 = vunpack.c.h.b16 %v143
    %v744 = vunpack.c.l.b16 %v144
    %v745 = vunpack.c.h.b16 %v144
    %v746 = vunpack.c.l.b16 %v145
    %v747 = vunpack.c.h.b16 %v145
    %v748 = vunpack.c.l.b16 %v146
    %v749 = vunpack.c.h.b16 %v146
    %v750 = vunpack.c.l.b16 %v147
    %v751 = vunpack.c.h.b16 %v147
    %v752 = vunpack.c.l.b16 %v148
    %v753 = vunpack.c.h.b16 %v148
    %v754 = vunpack.c.l.b16 %v149
    %v755 = vunpack.c.h.b16 %v149
    %v756 = vunpack.c.l.b16 %v150
    %v757 = vunpack.c.h.b16 %v150
    %v758 = vunpack.c.l.b16 %v151
    %v759 = vunpack.c.h.b16 %v151
    %v760 = vunpack.c.l.b16 %v152
    %v761 = vunpack.c.h.b16 %v152
    %v762 = vunpack.c.l.b16 %v153
    %v763 = vunpack.c.h.b16 %v153
    %v764 = vunpack.c.l.b16 %v154
    %v765 = vunpack.c.h.b16 %v154
    %v766 = vunpack.c.l.b16 %v155
    %v767 = vunpack.c.h.b16 %v155
    %v768 = vunpack.c.l.b16 %v156
    %v769 = vunpack.c.h.b16 %v156
    %v770 = vunpack.c.l.b16 %v157
    %v771 = vunpack.c.h.b16 %v157
    %v772 = vunpack.c.l.b16 %v158
    %v773 = vunpack.c.h.b16 %v158
    %v774 = vunpack.c.l.b16 %v159
    %v775 = vunpack.c.h.b16 %v159
    %v776 = vunpack.c.l.b16 %v160
    %v777 = vunpack.c.h.b16 %v160
    %v778 = vunpack.c.l.b16 %v161
    %v779 = vunpack.c.h.b16 %v161
    %v780 = vunpack.c.l.b16 %v162
    %v781 = vunpack.c.h.b16 %v162
    %v782 = vunpack.c.l.b16 %v163
    %v783 = vunpack.c.h.b16 %v163
    %v784 = vunpack.c.l.b16 %v164
    %v785 = vunpack.c.h.b16 %v164
    %v786 = vunpack.c.l.b16 %v165
    %v787 = vunpack.c.h.b16 %v165
    %v788 = vunpack.c.l.b16 %v166
    %v789 = vunpack.c.h.b16 %v166
    %v790 = vunpack.c.l.b16 %v167
    %v791 = vunpack.c.h.b16 %v167
    %v792 = vunpack.c.l.b16 %v168
    %v793 = vunpack.c.h.b16 %v168
    %v794 = vunpack.c.l.b16 %v169
    %v795 = vunpack.c.h.b16 %v169
    %v796 = vunpack.c.l.b16 %v170
    %v797 = vunpack.c.h.b16 %v170
    %v798 = vunpack.c.l.b16 %v171
    %v799 = vunpack.c.h.b16 %v171
    %v800 = vunpack.c.l.b16 %v172
    %v801 = vunpack.c.h.b16 %v172
    %v802 = vunpack.c.l.b16 %v173
    %v803 = vunpack.c.h.b16 %v173
    %v804 = vunpack.c.l.b16 %v174
    %v805 = vunpack.c.h.b16 %v174
    %v806 = vunpack.c.l.b16 %v175
    %v807 = vunpack.c.h.b16 %v175
    %v808 = vunpack.c.l.b16 %v176
    %v809 = vunpack.c.h.b16 %v176
    %v810 = vunpack.c.l.b16 %v177
    %v811 = vunpack.c.h.b16 %v177
    %v812 = vunpack.c.l.b16 %v178
    %v813 = vunpack.c.h.b16 %v178
    %v814 = vunpack.c.l.b16 %v179
    %v815 = vunpack.c.h.b16 %v179
    %v816 = vunpack.c.l.b16 %v180
    %v817 = vunpack.c.h.b16 %v180
    %v818 = vunpack.c.l.b16 %v181
    %v819 = vunpack.c.h.b16 %v181
    %v820 = vunpack.c.l.b16 %v182
    %v821 = vunpack.c.h.b16 %v182
    %v822 = vunpack.c.l.b16 %v183
    %v823 = vunpack.c.h.b16 %v183
    %v824 = vunpack.c.l.b16 %v184
    %v825 = vunpack.c.h.b16 %v184
    %v826 = vunpack.c.l.b16 %v185
    %v827 = vunpack.c.h.b16 %v185
    %v828 = vunpack.c.l.b16 %v186
    %v829 = vunpack.c.h.b16 %v186
    %v830 = vunpack.c.l.b16 %v187
    %v831 = vunpack.c.h.b16 %v187
    %v832 = vunpack.c.l.b16 %v188
    %v833 = vunpack.c.h.b16 %v188
    %v834 = vunpack.c.l.b16 %v189
    %v835 = vunpack.c.h.b16 %v189
    %v836 = vunpack.c.l.b16 %v190
    %v837 = vunpack.c.h.b16 %v190
    %v838 = vunpack.c.l.b16 %v191
    %v839 = vunpack.c.h.b16 %v191
    %v840 = vunpack.c.l.b16 %v192
    %v841 = vunpack.c.h.b16 %v192
    %v842 = vunpack.c.l.b16 %v193
    %v843 = vunpack.c.h.b16 %v193
    %v844 = vunpack.c.l.b16 %v194
    %v845 = vunpack.c.h.b16 %v194
    %v846 = vunpack.c.l.b16 %v195
    %v847 = vunpack.c.h.b16 %v195
    %v848 = vunpack.c.l.b16 %v196
    %v849 = vunpack.c.h.b16 %v196
    %v850 = vunpack.c.l.b16 %v197
    %v851 = vunpack.c.h.b16 %v197
    %v852 = vunpack.c.l.b16 %v198
    %v853 = vunpack.c.h.b16 %v198
    %v854 = vunpack.c.l.b16 %v199
    %v855 = vunpack.c.h.b16 %v199
    %v856 = vunpack.c.l.b16 %v200
    %v857 = vunpack.c.h.b16 %v200
    %v858 = vunpack.c.l.b16 %v201
    %v859 = vunpack.c.h.b16 %v201
    %v860 = vunpack.c.l.b16 %v202
    %v861 = vunpack.c.h.b16 %v202
    %v862 = vunpack.c.l.b16 %v203
    %v863 = vunpack.c.h.b16 %v203
    %v864 = vunpack.c.l.b16 %v204
    %v865 = vunpack.c.h.b16 %v204
    %v866 = vunpack.c.l.b16 %v205
    %v867 = vunpack.c.h.b16 %v205
    %v868 = vunpack.c.l.b16 %v206
    %v869 = vunpack.c.h.b16 %v206
    %v870 = vunpack.c.l.b16 %v207
    %v871 = vunpack.c.h.b16 %v207
    %v872 = vunpack.c.l.b16 %v208
    %v873 = vunpack.c.h.b16 %v208
    %v874 = vunpack.c.l.b16 %v209
    %v875 = vunpack.c.h.b16 %v209
    %v876 = vunpack.c.l.b16 %v210
    %v877 = vunpack.c.h.b16 %v210
    %v878 = vunpack.c.l.b16 %v211
    %v879 = vunpack.c.h.b16 %v211
    %v880 = vunpack.c.l.b16 %v212
    %v881 = vunpack.c.h.b16 %v212
    %v882 = vunpack.c.l.b16 %v213
    %v883 = vunpack.c.h.b16 %v213
    %v884 = vunpack.c.l.b16 %v214
    %v885 = vunpack.c.h.b16 %v214
    %v886 = vunpack.c.l.b16 %v215
    %v887 = vunpack.c.h.b16 %v215
    %v888 = vunpack.c.l.b16 %v216
    %v889 = vunpack.c.h.b16 %v216
    %v890 = vunpack.c.l.b16 %v217
    %v891 = vunpack.c.h.b16 %v217
    %v892 = vunpack.c.l.b16 %v218
    %v893 = vunpack.c.h.b16 %v218
    %v894 = vunpack.c.l.b16 %v219
    %v895 = vunpack.c.h.b16 %v219
    %v896 = vunpack.c.l.b16 %v220
    %v897 = vunpack.c.h.b16 %v220
    %v898 = vunpack.c.l.b16 %v221
    %v899 = vunpack.c.h.b16 %v221
    %v900 = vunpack.c.l.b16 %v222
    %v901 = vunpack.c.h.b16 %v222
    %v902 = vunpack.c.l.b16 %v223
    %v903 = vunpack.c.h.b16 %v223
    %v904 = vunpack.c.l.b16 %v224
    %v905 = vunpack.c.h.b16 %v224
    %v906 = vunpack.c.l.b16 %v225
    %v907 = vunpack.c.h.b16 %v225
    %v908 = vunpack.c.l.b16 %v226
    %v909 = vunpack.c.h.b16 %v226
    %v910 = vunpack.c.l.b16 %v227
    %v911 = vunpack.c.h.b16 %v227
    %v912 = vunpack.c.l.b16 %v228
    %v913 = vunpack.c.h.b16 %v228
    %v914 = vunpack.c.l.b16 %v229
    %v915 = vunpack.c.h.b16 %v229
    %v916 = vunpack.c.l.b16 %v230
    %v917 = vunpack.c.h.b16 %v230
    %v918 = vunpack.c.l.b16 %v231
    %v919 = vunpack.c.h.b16 %v231
    %v920 = vunpack.c.l.b16 %v232
    %v921 = vunpack.c.h.b16 %v232
    %v922 = vunpack.c.l.b16 %v233
    %v923 = vunpack.c.h.b16 %v233
    %v924 = vunpack.c.l.b16 %v234
    %v925 = vunpack.c.h.b16 %v234
    %v926 = vunpack.c.l.b16 %v235
    %v927 = vunpack.c.h.b16 %v235
    %v928 = vunpack.c.l.b16 %v236
    %v929 = vunpack.c.h.b16 %v236
    %v930 = vunpack.c.l.b16 %v237
    %v931 = vunpack.c.h.b16 %v237
    %v932 = vunpack.c.l.b16 %v238
    %v933 = vunpack.c.h.b16 %v238
    %v934 = vunpack.c.l.b16 %v239
    %v935 = vunpack.c.h.b16 %v239
    %v936 = vunpack.c.l.b16 %v240
    %v937 = vunpack.c.h.b16 %v240
    %v938 = vunpack.c.l.b16 %v241
    %v939 = vunpack.c.h.b16 %v241
    %v940 = vunpack.c.l.b16 %v242
    %v941 = vunpack.c.h.b16 %v242
    %v942 = vunpack.c.l.b16 %v243
    %v943 = vunpack.c.h.b16 %v243
    %v944 = vunpack.c.l.b16 %v244
    %v945 = vunpack.c.h.b16 %v244
    %v946 = vunpack.c.l.b16 %v245
    %v947 = vunpack.c.h.b16 %v245
    %v948 = vunpack.c.l.b16 %v246
    %v949 = vunpack.c.h.b16 %v246
    %v950 = vunpack.c.l.b16 %v247
    %v951 = vunpack.c.h.b16 %v247
    %v952 = vunpack.c.l.b16 %v248
    %v953 = vunpack.c.h.b16 %v248
    %v954 = vunpack.c.l.b16 %v249
    %v955 = vunpack.c.h.b16 %v249
    %v956 = vunpack.c.l.b16 %v250
    %v957 = vunpack.c.h.b16 %v250
    %v958 = vunpack.c.l.b16 %v251
    %v959 = vunpack.c.h.b16 %v251
    %v960 = vunpack.c.l.b16 %v252
    %v961 = vunpack.c.h.b16 %v252
    %v962 = vunpack.c.l.b16 %v253
    %v963 = vunpack.c.h.b16 %v253
    %v964 = vunpack.c.l.b16 %v254
    %v965 = vunpack.c.h.b16 %v254
    %v966 = vunpack.c.l.b16 %v255
    %v967 = vunpack.c.h.b16 %v255
    %v968 = vunpack.c.l.b16 %v256
    %v969 = vunpack.c.h.b16 %v256
    %v970 = vunpack.c.l.b16 %v257
    %v971 = vunpack.c.h.b16 %v257
    %v972 = vunpack.c.l.b16 %v258
    %v973 = vunpack.c.h.b16 %v258
    %v974 = vunpack.c.l.b16 %v259
    %v975 = vunpack.c.h.b16 %v259
    %v976 = vunpack.c.l.b16 %v260
    %v977 = vunpack.c.h.b16 %v260
    %v978 = vunpack.c.l.b16 %v261
    %v979 = vunpack.c.h.b16 %v261
    %v980 = vunpack.c.l.b16 %v262
    %v981 = vunpack.c.h.b16 %v262
    %v982 = vunpack.c.l.b16 %v263
    %v983 = vunpack.c.h.b16 %v263
    %v984 = vunpack.c.l.b16 %v264
    %v985 = vunpack.c.h.b16 %v264
    %v986 = vunpack.c.l.b16 %v265
    %v987 = vunpack.c.h.b16 %v265
    %v988 = vunpack.c.l.b16 %v266
    %v989 = vunpack.c.h.b16 %v266
    %v990 = vunpack.c.l.b16 %v267
    %v991 = vunpack.c.h.b16 %v267
    %v992 = vunpack.c.l.b16 %v268
    %v993 = vunpack.c.h.b16 %v268
    %v994 = vunpack.c.l.b16 %v269
    %v995 = vunpack.c.h.b16 %v269
    %v996 = vunpack.c.l.b16 %v270
    %v997 = vunpack.c.h.b16 %v270
    %v998 = vunpack.c.l.b16 %v271
    %v999 = vunpack.c.h.b16 %v271
    %v1000 = vunpack.c.l.b16 %v272
    %v1001 = vunpack.c.h.b16 %v272
    %v1002 = vunpack.c.l.b16 %v273
    %v1003 = vunpack.c.h.b16 %v273
    %v1004 = vunpack.c.l.b16 %v274
    %v1005 = vunpack.c.h.b16 %v274
    %v1006 = vunpack.c.l.b16 %v275
    %v1007 = vunpack.c.h.b16 %v275
    %v1008 = vunpack.c.l.b16 %v276
    %v1009 = vunpack.c.h.b16 %v276
    %v1010 = vunpack.c.l.b16 %v277
    %v1011 = vunpack.c.h.b16 %v277
    %v1012 = vunpack.c.l.b16 %v278
    %v1013 = vunpack.c.h.b16 %v278
    %v1014 = vunpack.c.l.b16 %v279
    %v1015 = vunpack.c.h.b16 %v279
    %v1016 = vunpack.c.l.b16 %v280
    %v1017 = vunpack.c.h.b16 %v280
    %v1018 = vunpack.c.l.b16 %v281
    %v1019 = vunpack.c.h.b16 %v281
    %v1020 = vunpack.c.l.b16 %v282
    %v1021 = vunpack.c.h.b16 %v282
    %v1022 = vunpack.c.l.b16 %v283
    %v1023 = vunpack.c.h.b16 %v283
    %v1024 = vunpack.c.l.b16 %v284
    %v1025 = vunpack.c.h.b16 %v284
    %v1026 = vunpack.c.l.b16 %v285
    %v1027 = vunpack.c.h.b16 %v285
    %v1028 = vunpack.c.l.b16 %v286
    %v1029 = vunpack.c.h.b16 %v286
    %v1030 = vunpack.c.l.b16 %v287
    %v1031 = vunpack.c.h.b16 %v287
    %v1032 = vunpack.c.l.b16 %v288
    %v1033 = vunpack.c.h.b16 %v288
    %v1034 = vunpack.c.l.b16 %v289
    %v1035 = vunpack.c.h.b16 %v289
    %v1036 = vunpack.c.l.b16 %v290
    %v1037 = vunpack.c.h.b16 %v290
    %v1038 = vunpack.c.l.b16 %v291
    %v1039 = vunpack.c.h.b16 %v291
    %v1040 = vunpack.c.l.b16 %v292
    %v1041 = vunpack.c.h.b16 %v292
    %v1042 = vunpack.c.l.b16 %v293
    %v1043 = vunpack.c.h.b16 %v293
    %v1044 = vunpack.c.l.b16 %v294
    %v1045 = vunpack.c.h.b16 %v294
    %v1046 = vunpack.c.l.b16 %v295
    %v1047 = vunpack.c.h.b16 %v295
    %v1048 = vunpack.c.l.b16 %v296
    %v1049 = vunpack.c.h.b16 %v296
    %v1050 = vunpack.c.l.b16 %v297
    %v1051 = vunpack.c.h.b16 %v297
    %v1052 = vunpack.c.l.b16 %v298
    %v1053 = vunpack.c.h.b16 %v298
    %v1054 = vunpack.c.l.b16 %v299
    %v1055 = vunpack.c.h.b16 %v299
    %v1056 = vunpack.c.l.b16 %v300
    %v1057 = vunpack.c.h.b16 %v300
    %v1058 = vunpack.c.l.b16 %v301
    %v1059 = vunpack.c.h.b16 %v301
    %v1060 = vunpack.c.l.b16 %v302
    %v1061 = vunpack.c.h.b16 %v302
    %v1062 = vunpack.c.l.b16 %v303
    %v1063 = vunpack.c.h.b16 %v303
    %v1064 = vunpack.c.l.b16 %v304
    %v1065 = vunpack.c.h.b16 %v304
    %v1066 = vunpack.c.l.b16 %v305
    %v1067 = vunpack.c.h.b16 %v305
    %v1068 = vunpack.c.l.b16 %v306
    %v1069 = vunpack.c.h.b16 %v306
    %v1070 = vunpack.c.l.b16 %v307
    %v1071 = vunpack.c.h.b16 %v307
    %v1072 = vunpack.c.l.b16 %v308
    %v1073 = vunpack.c.h.b16 %v308
    %v1074 = vunpack.c.l.b16 %v309
    %v1075 = vunpack.c.h.b16 %v309
    %v1076 = vunpack.c.l.b16 %v310
    %v1077 = vunpack.c.h.b16 %v310
    %v1078 = vunpack.c.l.b16 %v311
    %v1079 = vunpack.c.h.b16 %v311
    %v1080 = vunpack.c.l.b16 %v312
    %v1081 = vunpack.c.h.b16 %v312
    %v1082 = vunpack.c.l.b16 %v313
    %v1083 = vunpack.c.h.b16 %v313
    %v1084 = vunpack.c.l.b16 %v314
    %v1085 = vunpack.c.h.b16 %v314
    %v1086 = vunpack.c.l.b16 %v315
    %v1087 = vunpack.c.h.b16 %v315
    %v1088 = vunpack.c.l.b16 %v316
    %v1089 = vunpack.c.h.b16 %v316
    %v1090 = vunpack.c.l.b16 %v317
    %v1091 = vunpack.c.h.b16 %v317
    %v1092 = vunpack.c.l.b16 %v318
    %v1093 = vunpack.c.h.b16 %v318
    %v1094 = vunpack.c.l.b16 %v319
    %v1095 = vunpack.c.h.b16 %v319
    %v1096 = vunpack.c.l.b16 %v320
    %v1097 = vunpack.c.h.b16 %v320
    %v1098 = vunpack.c.l.b16 %v321
    %v1099 = vunpack.c.h.b16 %v321
    %v1100 = vunpack.c.l.b16 %v322
    %v1101 = vunpack.c.h.b16 %v322
    %v1102 = vunpack.c.l.b16 %v323
    %v1103 = vunpack.c.h.b16 %v323
    %v1104 = vpack.c.b16 %v594, %v592
    %v1105 = vpack.c.b16 %v595, %v593
    %v1106 = vpack.c.b16 %v598, %v596
    %v1107 = vpack.c.b16 %v599, %v597
    %v1108 = vpack.c.b16 %v602, %v600
    %v1109 = vpack.c.b16 %v603, %v601
    %v1110 = vpack.c.b16 %v606, %v604
    %v1111 = vpack.c.b16 %v607, %v605
    %v1112 = vpack.c.b16 %v610, %v608
    %v1113 = vpack.c.b16 %v611, %v609
    %v1114 = vpack.c.b16 %v614, %v612
    %v1115 = vpack.c.b16 %v615, %v613
    %v1116 = vpack.c.b16 %v618, %v616
    %v1117 = vpack.c.b16 %v619, %v617
    %v1118 = vpack.c.b16 %v622, %v620
    %v1119 = vpack.c.b16 %v623, %v621
    %v1120 = vpack.c.b16 %v626, %v624
    %v1121 = vpack.c.b16 %v627, %v625
    %v1122 = vpack.c.b16 %v630, %v628
    %v1123 = vpack.c.b16 %v631, %v629
    %v1124 = vpack.c.b16 %v634, %v632
    %v1125 = vpack.c.b16 %v635, %v633
    %v1126 = vpack.c.b16 %v638, %v636
    %v1127 = vpack.c.b16 %v639, %v637
    %v1128 = vpack.c.b16 %v642, %v640
    %v1129 = vpack.c.b16 %v643, %v641
    %v1130 = vpack.c.b16 %v646, %v644
    %v1131 = vpack.c.b16 %v647, %v645
    %v1132 = vpack.c.b16 %v650, %v648
    %v1133 = vpack.c.b16 %v651, %v649
    %v1134 = vpack.c.b16 %v654, %v652
    %v1135 = vpack.c.b16 %v655, %v653
    %v1136 = vpack.c.b16 %v658, %v656
    %v1137 = vpack.c.b16 %v659, %v657
    %v1138 = vpack.c.b16 %v662, %v660
    %v1139 = vpack.c.b16 %v663, %v661
    %v1140 = vpack.c.b16 %v666, %v664
    %v1141 = vpack.c.b16 %v667, %v665
    %v1142 = vpack.c.b16 %v670, %v668
    %v1143 = vpack.c.b16 %v671, %v669
    %v1144 = vpack.c.b16 %v674, %v672
    %v1145 = vpack.c.b16 %v675, %v673
    %v1146 = vpack.c.b16 %v678, %v676
    %v1147 = vpack.c.b16 %v679, %v677
    %v1148 = vpack.c.b16 %v682, %v680
    %v1149 = vpack.c.b16 %v683, %v681
    %v1150 = vpack.c.b16 %v686, %v684
    %v1151 = vpack.c.b16 %v687, %v685
    %v1152 = vpack.c.b16 %v690, %v688
    %v1153 = vpack.c.b16 %v691, %v689
    %v1154 = vpack.c.b16 %v694, %v692
    %v1155 = vpack.c.b16 %v695, %v693
    %v1156 = vpack.c.b16 %v698, %v696
    %v1157 = vpack.c.b16 %v699, %v697
    %v1158 = vpack.c.b16 %v702, %v700
    %v1159 = vpack.c.b16 %v703, %v701
    %v1160 = vpack.c.b16 %v706, %v704
    %v1161 = vpack.c.b16 %v707, %v705
    %v1162 = vpack.c.b16 %v710, %v708
    %v1163 = vpack.c.b16 %v711, %v709
    %v1164 = vpack.c.b16 %v714, %v712
    %v1165 = vpack.c.b16 %v715, %v713
    %v1166 = vpack.c.b16 %v718, %v716
    %v1167 = vpack.c.b16 %v719, %v717
    %v1168 = vpack.c.b16 %v722, %v720
    %v1169 = vpack.c.b16 %v723, %v721
    %v1170 = vpack.c.b16 %v726, %v724
    %v1171 = vpack.c.b16 %v727, %v725
    %v1172 = vpack.c.b16 %v730, %v728
    %v1173 = vpack.c.b16 %v731, %v729
    %v1174 = vpack.c.b16 %v734, %v732
    %v1175 = vpack.c.b16 %v735, %v733
    %v1176 = vpack.c.b16 %v738, %v736
    %v1177 = vpack.c.b16 %v739, %v737
    %v1178 = vpack.c.b16 %v742, %v740
    %v1179 = vpack.c.b16 %v743, %v741
    %v1180 = vpack.c.b16 %v746, %v744
    %v1181 = vpack.c.b16 %v747, %v745
    %v1182 = vpack.c.b16 %v750, %v748
    %v1183 = vpack.c.b16 %v751, %v749
    %v1184 = vpack.c.b16 %v754, %v752
    %v1185 = vpack.c.b16 %v755, %v753
    %v1186 = vpack.c.b16 %v758, %v756
    %v1187 = vpack.c.b16 %v759, %v757
    %v1188 = vpack.c.b16 %v762, %v760
    %v1189 = vpack.c.b16 %v763, %v761
    %v1190 = vpack.c.b16 %v766, %v764
    %v1191 = vpack.c.b16 %v767, %v765
    %v1192 = vpack.c.b16 %v770, %v768
    %v1193 = vpack.c.b16 %v771, %v769
    %v1194 = vpack.c.b16 %v774, %v772
    %v1195 = vpack.c.b16 %v775, %v773
    %v1196 = vpack.c.b16 %v778, %v776
    %v1197 = vpack.c.b16 %v779, %v777
    %v1198 = vpack.c.b16 %v782, %v780
    %v1199 = vpack.c.b16 %v783, %v781
    %v1200 = vpack.c.b16 %v786, %v784
    %v1201 = vpack.c.b16 %v787, %v785
    %v1202 = vpack.c.b16 %v790, %v788
    %v1203 = vpack.c.b16 %v791, %v789
    %v1204 = vpack.c.b16 %v794, %v792
    %v1205 = vpack.c.b16 %v795, %v793
    %v1206 = vpack.c.b16 %v798, %v796
    %v1207 = vpack.c.b16 %v799, %v797
    %v1208 = vpack.c.b16 %v802, %v800
    %v1209 = vpack.c.b16 %v803, %v801
    %v1210 = vpack.c.b16 %v806, %v804
    %v1211 = vpack.c.b16 %v807, %v805
    %v1212 = vpack.c.b16 %v810, %v808
    %v1213 = vpack.c.b16 %v811, %v809
    %v1214 = vpack.c.b16 %v814, %v812
    %v1215 = vpack.c.b16 %v815, %v813
    %v1216 = vpack.c.b16 %v818, %v816
    %v1217 = vpack.c.b16 %v819, %v817
    %v1218 = vpack.c.b16 %v822, %v820
    %v1219 = vpack.c.b16 %v823, %v821
    %v1220 = vpack.c.b16 %v826, %v824
    %v1221 = vpack.c.b16 %v827, %v825
    %v1222 = vpack.c.b16 %v830, %v828
    %v1223 = vpack.c.b16 %v831, %v829
    %v1224 = vpack.c.b16 %v834, %v832
    %v1225 = vpack.c.b16 %v835, %v833
    %v1226 = vpack.c.b16 %v838, %v836
    %v1227 = vpack.c.b16 %v839, %v837
    %v1228 = vpack.c.b16 %v842, %v840
    %v1229 = vpack.c.b16 %v843, %v841
    %v1230 = vpack.c.b16 %v846, %v844
    %v1231 = vpack.c.b16 %v847, %v845
    %v1232 = vpack.c.b16 %v850, %v848
    %v1233 = vpack.c.b16 %v851, %v849
    %v1234 = vpack.c.b16 %v854, %v852
    %v1235 = vpack.c.b16 %v855, %v853
    %v1236 = vpack.c.b16 %v858, %v856
    %v1237 = vpack.c.b16 %v859, %v857
    %v1238 = vpack.c.b16 %v862, %v860
    %v1239 = vpack.c.b16 %v863, %v861
    %v1240 = vpack.c.b16 %v866, %v864
    %v1241 = vpack.c.b16 %v867, %v865
    %v1242 = vpack.c.b16 %v870, %v868
    %v1243 = vpack.c.b16 %v871, %v869
    %v1244 = vpack.c.b16 %v874, %v872
    %v1245 = vpack.c.b16 %v875, %v873
    %v1246 = vpack.c.b16 %v878, %v876
    %v1247 = vpack.c.b16 %v879, %v877
    %v1248 = vpack.c.b16 %v882, %v880
    %v1249 = vpack.c.b16 %v883, %v881
    %v1250 = vpack.c.b16 %v886, %v884
    %v1251 = vpack.c.b16 %v887, %v885
    %v1252 = vpack.c.b16 %v890, %v888
    %v1253 = vpack.c.b16 %v891, %v889
    %v1254 = vpack.c.b16 %v894, %v892
    %v1255 = vpack.c.b16 %v895, %v893
    %v1256 = vpack.c.b16 %v898, %v896
    %v1257 = vpack.c.b16 %v899, %v897
    %v1258 = vpack.c.b16 %v902, %v900
    %v1259 = vpack.c.b16 %v903, %v901
    %v1260 = vpack.c.b16 %v906, %v904
    %v1261 = vpack.c.b16 %v907, %v905
    %v1262 = vpack.c.b16 %v910, %v908
    %v1263 = vpack.c.b16 %v911, %v909
    %v1264 = vpack.c.b16 %v914, %v912
    %v1265 = vpack.c.b16 %v915, %v913
    %v1266 = vpack.c.b16 %v918, %v916
    %v1267 = vpack.c.b16 %v919, %v917
    %v1268 = vpack.c.b16 %v922, %v920
    %v1269 = vpack.c.b16 %v923, %v921
    %v1270 = vpack.c.b16 %v926, %v924
    %v1271 = vpack.c.b16 %v927, %v925
    %v1272 = vpack.c.b16 %v930, %v928
    %v1273 = vpack.c.b16 %v931, %v929
    %v1274 = vpack.c.b16 %v934, %v932
    %v1275 = vpack.c.b16 %v935, %v933
    %v1276 = vpack.c.b16 %v938, %v936
    %v1277 = vpack.c.b16 %v939, %v937
    %v1278 = vpack.c.b16 %v942, %v940
    %v1279 = vpack.c.b16 %v943, %v941
    %v1280 = vpack.c.b16 %v946, %v944
    %v1281 = vpack.c.b16 %v947, %v945
    %v1282 = vpack.c.b16 %v950, %v948
    %v1283 = vpack.c.b16 %v951, %v949
    %v1284 = vpack.c.b16 %v954, %v952
    %v1285 = vpack.c.b16 %v955, %v953
    %v1286 = vpack.c.b16 %v958, %v956
    %v1287 = vpack.c.b16 %v959, %v957
    %v1288 = vpack.c.b16 %v962, %v960
    %v1289 = vpack.c.b16 %v963, %v961
    %v1290 = vpack.c.b16 %v966, %v964
    %v1291 = vpack.c.b16 %v967, %v965
    %v1292 = vpack.c.b16 %v970, %v968
    %v1293 = vpack.c.b16 %v971, %v969
    %v1294 = vpack.c.b16 %v974, %v972
    %v1295 = vpack.c.b16 %v975, %v973
    %v1296 = vpack.c.b16 %v978, %v976
    %v1297 = vpack.c.b16 %v979, %v977
    %v1298 = vpack.c.b16 %v982, %v980
    %v1299 = vpack.c.b16 %v983, %v981
    %v1300 = vpack.c.b16 %v986, %v984
    %v1301 = vpack.c.b16 %v987, %v985
    %v1302 = vpack.c.b16 %v990, %v988
    %v1303 = vpack.c.b16 %v991, %v989
    %v1304 = vpack.c.b16 %v994, %v992
    %v1305 = vpack.c.b16 %v995, %v993
    %v1306 = vpack.c.b16 %v998, %v996
    %v1307 = vpack.c.b16 %v999, %v997
    %v1308 = vpack.c.b16 %v1002, %v1000
    %v1309 = vpack.c.b16 %v1003, %v1001
    %v1310 = vpack.c.b16 %v1006, %v1004
    %v1311 = vpack.c.b16 %v1007, %v1005
    %v1312 = vpack.c.b16 %v1010, %v1008
    %v1313 = vpack.c.b16 %v1011, %v1009
    %v1314 = vpack.c.b16 %v1014, %v1012
    %v1315 = vpack.c.b16 %v1015, %v1013
    %v1316 = vpack.c.b16 %v1018, %v1016
    %v1317 = vpack.c.b16 %v1019, %v1017
    %v1318 = vpack.c.b16 %v1022, %v1020
    %v1319 = vpack.c.b16 %v1023, %v1021
    %v1320 = vpack.c.b16 %v1026, %v1024
    %v1321 = vpack.c.b16 %v1027, %v1025
    %v1322 = vpack.c.b16 %v1030, %v1028
    %v1323 = vpack.c.b16 %v1031, %v1029
    %v1324 = vpack.c.b16 %v1034, %v1032
    %v1325 = vpack.c.b16 %v1035, %v1033
    %v1326 = vpack.c.b16 %v1038, %v1036
    %v1327 = vpack.c.b16 %v1039, %v1037
    %v1328 = vpack.c.b16 %v1042, %v1040
    %v1329 = vpack.c.b16 %v1043, %v1041
    %v1330 = vpack.c.b16 %v1046, %v1044
    %v1331 = vpack.c.b16 %v1047, %v1045
    %v1332 = vpack.c.b16 %v1050, %v1048
    %v1333 = vpack.c.b16 %v1051, %v1049
    %v1334 = vpack.c.b16 %v1054, %v1052
    %v1335 = vpack.c.b16 %v1055, %v1053
    %v1336 = vpack.c.b16 %v1058, %v1056
    %v1337 = vpack.c.b16 %v1059, %v1057
    %v1338 = vpack.c.b16 %v1062, %v1060
    %v1339 = vpack.c.b16 %v1063, %v1061
    %v1340 = vpack.c.b16 %v1066, %v1064
    %v1341 = vpack.c.b16 %v1067, %v1065
    %v1342 = vpack.c.b16 %v1070, %v1068
    %v1343 = vpack.c.b16 %v1071, %v1069
    %v1344 = vpack.c.b16 %v1074, %v1072
    %v1345 = vpack.c.b16 %v1075, %v1073
    %v1346 = vpack.c.b16 %v1078, %v1076
    %v1347 = vpack.c.b16 %v1079, %v1077
    %v1348 = vpack.c.b16 %v1082, %v1080
    %v1349 = vpack.c.b16 %v1083, %v1081
    %v1350 = vpack.c.b16 %v1086, %v1084
    %v1351 = vpack.c.b16 %v1087, %v1085
    %v1352 = vpack.c.b16 %v1090, %v1088
    %v1353 = vpack.c.b16 %v1091, %v1089
    %v1354 = vpack.c.b16 %v1094, %v1092
    %v1355 = vpack.c.b16 %v1095, %v1093
    %v1356 = vpack.c.b16 %v1098, %v1096
    %v1357 = vpack.c.b16 %v1099, %v1097
    %v1358 = vpack.c.b16 %v1102, %v1100
    %v1359 = vpack.c.b16 %v1103, %v1101
    %1616 = vmatprep.subr.bf16.mxu0 %v1119
    %1617 = vmatpush1.bf16.msra.mxu0 %v1118
    %1618 = vmatprep.subr.bf16.mxu0 %v1117
    %1619 = vmatpush1.bf16.msra.mxu0 %v1116
    %1620 = vmatprep.subr.bf16.mxu0 %v1115
    %1621 = vmatpush1.bf16.msra.mxu0 %v1114
    %1622 = vmatprep.subr.bf16.mxu0 %v1113
    %1623 = vmatpush1.bf16.msra.mxu0 %v1112
    %1624 = vmatprep.subr.bf16.mxu0 %v1111
    %1625 = vmatpush1.bf16.msra.mxu0 %v1110
    %1626 = vmatprep.subr.bf16.mxu0 %v1109
    %1627 = vmatpush1.bf16.msra.mxu0 %v1108
    %1628 = vmatprep.subr.bf16.mxu0 %v1107
    %1629 = vmatpush1.bf16.msra.mxu0 %v1106
    %1630 = vmatprep.subr.bf16.mxu0 %v1105
    %1631 = vmatpush1.bf16.msra.mxu0 %v1104
    %1632 = vmatprep.subr.bf16.mxu0 %v1135
    %1633 = vmatpush2.bf16.msra.mxu0 %v1134
    %1634 = vmatprep.subr.bf16.mxu0 %v1133
    %1635 = vmatpush2.bf16.msra.mxu0 %v1132
    %1636 = vmatprep.subr.bf16.mxu0 %v1131
    %1637 = vmatpush2.bf16.msra.mxu0 %v1130
    %1638 = vmatprep.subr.bf16.mxu0 %v1129
    %1639 = vmatpush2.bf16.msra.mxu0 %v1128
    %1640 = vmatprep.subr.bf16.mxu0 %v1127
    %1641 = vmatpush2.bf16.msra.mxu0 %v1126
    %1642 = vmatprep.subr.bf16.mxu0 %v1125
    %1643 = vmatpush2.bf16.msra.mxu0 %v1124
    %1644 = vmatprep.subr.bf16.mxu0 %v1123
    %1645 = vmatpush2.bf16.msra.mxu0 %v1122
    %1646 = vmatprep.subr.bf16.mxu0 %v1121
    %1647 = vmatpush2.bf16.msra.mxu0 %v1120
    %1648 = vmatprep.mubr.bf16.mxu0 %v53
    %1649 = vmatmul.mubr.bf16.gmra.mxu0 %v52
    %v1650 = vpop.f32.mrf.mxu0
    %v1651 = vadd.f32 %v329, %v1650
    %v1652 = vpop.f32.mrf.mxu0
    %v1653 = vadd.f32 %v333, %v1652
    %v1654 = vpop.f32.mrf.mxu0
    %v1655 = vpop.f32.mrf.mxu0
    %1656 = vdwg.mxu0
    %1657 = vmatprep.subr.bf16.mxu0 %v1151
    %1658 = vmatpush1.bf16.msra.mxu0 %v1150
    %1659 = vmatprep.subr.bf16.mxu0 %v1149
    %1660 = vmatpush1.bf16.msra.mxu0 %v1148
    %1661 = vmatprep.subr.bf16.mxu0 %v1147
    %1662 = vmatpush1.bf16.msra.mxu0 %v1146
    %1663 = vmatprep.subr.bf16.mxu0 %v1145
    %1664 = vmatpush1.bf16.msra.mxu0 %v1144
    %1665 = vmatprep.subr.bf16.mxu0 %v1143
    %1666 = vmatpush1.bf16.msra.mxu0 %v1142
    %1667 = vmatprep.subr.bf16.mxu0 %v1141
    %1668 = vmatpush1.bf16.msra.mxu0 %v1140
    %1669 = vmatprep.subr.bf16.mxu0 %v1139
    %1670 = vmatpush1.bf16.msra.mxu0 %v1138
    %1671 = vmatprep.subr.bf16.mxu0 %v1137
    %1672 = vmatpush1.bf16.msra.mxu0 %v1136
    %1673 = vmatprep.subr.bf16.mxu0 %v1167
    %1674 = vmatpush2.bf16.msra.mxu0 %v1166
    %1675 = vmatprep.subr.bf16.mxu0 %v1165
    %1676 = vmatpush2.bf16.msra.mxu0 %v1164
    %1677 = vmatprep.subr.bf16.mxu0 %v1163
    %1678 = vmatpush2.bf16.msra.mxu0 %v1162
    %1679 = vmatprep.subr.bf16.mxu0 %v1161
    %1680 = vmatpush2.bf16.msra.mxu0 %v1160
    %1681 = vmatprep.subr.bf16.mxu0 %v1159
    %1682 = vmatpush2.bf16.msra.mxu0 %v1158
    %1683 = vmatprep.subr.bf16.mxu0 %v1157
    %1684 = vmatpush2.bf16.msra.mxu0 %v1156
    %1685 = vmatprep.subr.bf16.mxu0 %v1155
    %1686 = vmatpush2.bf16.msra.mxu0 %v1154
    %1687 = vmatprep.subr.bf16.mxu0 %v1153
    %1688 = vmatpush2.bf16.msra.mxu0 %v1152
    %1689 = vmatprep.mubr.bf16.mxu0 %v55
    %1690 = vmatmul.mubr.bf16.gmra.mxu0 %v54
    %v1691 = vpop.f32.mrf.mxu0
    %v1692 = vadd.f32 %v1651, %v1691
    %v1693 = vpop.f32.mrf.mxu0
    %v1694 = vadd.f32 %v1653, %v1693
    %v1695 = vpop.f32.mrf.mxu0
    %v1696 = vpop.f32.mrf.mxu0
    %1697 = vdwg.mxu0
    %1698 = vmatprep.subr.bf16.mxu0 %v1183
    %1699 = vmatpush1.bf16.msra.mxu0 %v1182
    %1700 = vmatprep.subr.bf16.mxu0 %v1181
    %1701 = vmatpush1.bf16.msra.mxu0 %v1180
    %1702 = vmatprep.subr.bf16.mxu0 %v1179
    %1703 = vmatpush1.bf16.msra.mxu0 %v1178
    %1704 = vmatprep.subr.bf16.mxu0 %v1177
    %1705 = vmatpush1.bf16.msra.mxu0 %v1176
    %1706 = vmatprep.subr.bf16.mxu0 %v1175
    %1707 = vmatpush1.bf16.msra.mxu0 %v1174
    %1708 = vmatprep.subr.bf16.mxu0 %v1173
    %1709 = vmatpush1.bf16.msra.mxu0 %v1172
    %1710 = vmatprep.subr.bf16.mxu0 %v1171
    %1711 = vmatpush1.bf16.msra.mxu0 %v1170
    %1712 = vmatprep.subr.bf16.mxu0 %v1169
    %1713 = vmatpush1.bf16.msra.mxu0 %v1168
    %1714 = vmatprep.subr.bf16.mxu0 %v1199
    %1715 = vmatpush2.bf16.msra.mxu0 %v1198
    %1716 = vmatprep.subr.bf16.mxu0 %v1197
    %1717 = vmatpush2.bf16.msra.mxu0 %v1196
    %1718 = vmatprep.subr.bf16.mxu0 %v1195
    %1719 = vmatpush2.bf16.msra.mxu0 %v1194
    %1720 = vmatprep.subr.bf16.mxu0 %v1193
    %1721 = vmatpush2.bf16.msra.mxu0 %v1192
    %1722 = vmatprep.subr.bf16.mxu0 %v1191
    %1723 = vmatpush2.bf16.msra.mxu0 %v1190
    %1724 = vmatprep.subr.bf16.mxu0 %v1189
    %1725 = vmatpush2.bf16.msra.mxu0 %v1188
    %1726 = vmatprep.subr.bf16.mxu0 %v1187
    %1727 = vmatpush2.bf16.msra.mxu0 %v1186
    %1728 = vmatprep.subr.bf16.mxu0 %v1185
    %1729 = vmatpush2.bf16.msra.mxu0 %v1184
    %1730 = vmatprep.mubr.bf16.mxu0 %v57
    %1731 = vmatmul.mubr.bf16.gmra.mxu0 %v56
    %v1732 = vpop.f32.mrf.mxu0
    %v1733 = vadd.f32 %v1692, %v1732
    %v1734 = vpop.f32.mrf.mxu0
    %v1735 = vadd.f32 %v1694, %v1734
    %v1736 = vpop.f32.mrf.mxu0
    %v1737 = vpop.f32.mrf.mxu0
    %1738 = vdwg.mxu0
    %1739 = vmatprep.subr.bf16.mxu0 %v1215
    %1740 = vmatpush1.bf16.msra.mxu0 %v1214
    %1741 = vmatprep.subr.bf16.mxu0 %v1213
    %1742 = vmatpush1.bf16.msra.mxu0 %v1212
    %1743 = vmatprep.subr.bf16.mxu0 %v1211
    %1744 = vmatpush1.bf16.msra.mxu0 %v1210
    %1745 = vmatprep.subr.bf16.mxu0 %v1209
    %1746 = vmatpush1.bf16.msra.mxu0 %v1208
    %1747 = vmatprep.subr.bf16.mxu0 %v1207
    %1748 = vmatpush1.bf16.msra.mxu0 %v1206
    %1749 = vmatprep.subr.bf16.mxu0 %v1205
    %1750 = vmatpush1.bf16.msra.mxu0 %v1204
    %1751 = vmatprep.subr.bf16.mxu0 %v1203
    %1752 = vmatpush1.bf16.msra.mxu0 %v1202
    %1753 = vmatprep.subr.bf16.mxu0 %v1201
    %1754 = vmatpush1.bf16.msra.mxu0 %v1200
    %1755 = vmatprep.subr.bf16.mxu0 %v1231
    %1756 = vmatpush2.bf16.msra.mxu0 %v1230
    %1757 = vmatprep.subr.bf16.mxu0 %v1229
    %1758 = vmatpush2.bf16.msra.mxu0 %v1228
    %1759 = vmatprep.subr.bf16.mxu0 %v1227
    %1760 = vmatpush2.bf16.msra.mxu0 %v1226
    %1761 = vmatprep.subr.bf16.mxu0 %v1225
    %1762 = vmatpush2.bf16.msra.mxu0 %v1224
    %1763 = vmatprep.subr.bf16.mxu0 %v1223
    %1764 = vmatpush2.bf16.msra.mxu0 %v1222
    %1765 = vmatprep.subr.bf16.mxu0 %v1221
    %1766 = vmatpush2.bf16.msra.mxu0 %v1220
    %1767 = vmatprep.subr.bf16.mxu0 %v1219
    %1768 = vmatpush2.bf16.msra.mxu0 %v1218
    %1769 = vmatprep.subr.bf16.mxu0 %v1217
    %1770 = vmatpush2.bf16.msra.mxu0 %v1216
    %1771 = vmatprep.mubr.bf16.mxu0 %v59
    %1772 = vmatmul.mubr.bf16.gmra.mxu0 %v58
    %v1773 = vpop.f32.mrf.mxu0
    %v1774 = vadd.f32 %v1733, %v1773
    %v1775 = vpop.f32.mrf.mxu0
    %v1776 = vadd.f32 %v1735, %v1775
    %v1777 = vpop.f32.mrf.mxu0
    %v1778 = vpop.f32.mrf.mxu0
    %1779 = vdwg.mxu0
    %1780 = vmatprep.subr.bf16.mxu0 %v1247
    %1781 = vmatpush1.bf16.msra.mxu0 %v1246
    %1782 = vmatprep.subr.bf16.mxu0 %v1245
    %1783 = vmatpush1.bf16.msra.mxu0 %v1244
    %1784 = vmatprep.subr.bf16.mxu0 %v1243
    %1785 = vmatpush1.bf16.msra.mxu0 %v1242
    %1786 = vmatprep.subr.bf16.mxu0 %v1241
    %1787 = vmatpush1.bf16.msra.mxu0 %v1240
    %1788 = vmatprep.subr.bf16.mxu0 %v1239
    %1789 = vmatpush1.bf16.msra.mxu0 %v1238
    %1790 = vmatprep.subr.bf16.mxu0 %v1237
    %1791 = vmatpush1.bf16.msra.mxu0 %v1236
    %1792 = vmatprep.subr.bf16.mxu0 %v1235
    %1793 = vmatpush1.bf16.msra.mxu0 %v1234
    %1794 = vmatprep.subr.bf16.mxu0 %v1233
    %1795 = vmatpush1.bf16.msra.mxu0 %v1232
    %1796 = vmatprep.subr.bf16.mxu0 %v1263
    %1797 = vmatpush2.bf16.msra.mxu0 %v1262
    %1798 = vmatprep.subr.bf16.mxu0 %v1261
    %1799 = vmatpush2.bf16.msra.mxu0 %v1260
    %1800 = vmatprep.subr.bf16.mxu0 %v1259
    %1801 = vmatpush2.bf16.msra.mxu0 %v1258
    %1802 = vmatprep.subr.bf16.mxu0 %v1257
    %1803 = vmatpush2.bf16.msra.mxu0 %v1256
    %1804 = vmatprep.subr.bf16.mxu0 %v1255
    %1805 = vmatpush2.bf16.msra.mxu0 %v1254
    %1806 = vmatprep.subr.bf16.mxu0 %v1253
    %1807 = vmatpush2.bf16.msra.mxu0 %v1252
    %1808 = vmatprep.subr.bf16.mxu0 %v1251
    %1809 = vmatpush2.bf16.msra.mxu0 %v1250
    %1810 = vmatprep.subr.bf16.mxu0 %v1249
    %1811 = vmatpush2.bf16.msra.mxu0 %v1248
    %1812 = vmatprep.mubr.bf16.mxu0 %v61
    %1813 = vmatmul.mubr.bf16.gmra.mxu0 %v60
    %v1814 = vpop.f32.mrf.mxu0
    %v1815 = vadd.f32 %v1774, %v1814
    %v1816 = vpop.f32.mrf.mxu0
    %v1817 = vadd.f32 %v1776, %v1816
    %v1818 = vpop.f32.mrf.mxu0
    %v1819 = vpop.f32.mrf.mxu0
    %1820 = vdwg.mxu0
    %1821 = vmatprep.subr.bf16.mxu0 %v1279
    %1822 = vmatpush1.bf16.msra.mxu0 %v1278
    %1823 = vmatprep.subr.bf16.mxu0 %v1277
    %1824 = vmatpush1.bf16.msra.mxu0 %v1276
    %1825 = vmatprep.subr.bf16.mxu0 %v1275
    %1826 = vmatpush1.bf16.msra.mxu0 %v1274
    %1827 = vmatprep.subr.bf16.mxu0 %v1273
    %1828 = vmatpush1.bf16.msra.mxu0 %v1272
    %1829 = vmatprep.subr.bf16.mxu0 %v1271
    %1830 = vmatpush1.bf16.msra.mxu0 %v1270
    %1831 = vmatprep.subr.bf16.mxu0 %v1269
    %1832 = vmatpush1.bf16.msra.mxu0 %v1268
    %1833 = vmatprep.subr.bf16.mxu0 %v1267
    %1834 = vmatpush1.bf16.msra.mxu0 %v1266
    %1835 = vmatprep.subr.bf16.mxu0 %v1265
    %1836 = vmatpush1.bf16.msra.mxu0 %v1264
    %1837 = vmatprep.subr.bf16.mxu0 %v1295
    %1838 = vmatpush2.bf16.msra.mxu0 %v1294
    %1839 = vmatprep.subr.bf16.mxu0 %v1293
    %1840 = vmatpush2.bf16.msra.mxu0 %v1292
    %1841 = vmatprep.subr.bf16.mxu0 %v1291
    %1842 = vmatpush2.bf16.msra.mxu0 %v1290
    %1843 = vmatprep.subr.bf16.mxu0 %v1289
    %1844 = vmatpush2.bf16.msra.mxu0 %v1288
    %1845 = vmatprep.subr.bf16.mxu0 %v1287
    %1846 = vmatpush2.bf16.msra.mxu0 %v1286
    %1847 = vmatprep.subr.bf16.mxu0 %v1285
    %1848 = vmatpush2.bf16.msra.mxu0 %v1284
    %1849 = vmatprep.subr.bf16.mxu0 %v1283
    %1850 = vmatpush2.bf16.msra.mxu0 %v1282
    %1851 = vmatprep.subr.bf16.mxu0 %v1281
    %1852 = vmatpush2.bf16.msra.mxu0 %v1280
    %1853 = vmatprep.mubr.bf16.mxu0 %v63
    %1854 = vmatmul.mubr.bf16.gmra.mxu0 %v62
    %v1855 = vpop.f32.mrf.mxu0
    %v1856 = vadd.f32 %v1815, %v1855
    %v1857 = vpop.f32.mrf.mxu0
    %v1858 = vadd.f32 %v1817, %v1857
    %v1859 = vpop.f32.mrf.mxu0
    %v1860 = vpop.f32.mrf.mxu0
    %1861 = vdwg.mxu0
    %1862 = vmatprep.subr.bf16.mxu0 %v1311
    %1863 = vmatpush1.bf16.msra.mxu0 %v1310
    %1864 = vmatprep.subr.bf16.mxu0 %v1309
    %1865 = vmatpush1.bf16.msra.mxu0 %v1308
    %1866 = vmatprep.subr.bf16.mxu0 %v1307
    %1867 = vmatpush1.bf16.msra.mxu0 %v1306
    %1868 = vmatprep.subr.bf16.mxu0 %v1305
    %1869 = vmatpush1.bf16.msra.mxu0 %v1304
    %1870 = vmatprep.subr.bf16.mxu0 %v1303
    %1871 = vmatpush1.bf16.msra.mxu0 %v1302
    %1872 = vmatprep.subr.bf16.mxu0 %v1301
    %1873 = vmatpush1.bf16.msra.mxu0 %v1300
    %1874 = vmatprep.subr.bf16.mxu0 %v1299
    %1875 = vmatpush1.bf16.msra.mxu0 %v1298
    %1876 = vmatprep.subr.bf16.mxu0 %v1297
    %1877 = vmatpush1.bf16.msra.mxu0 %v1296
    %1878 = vmatprep.subr.bf16.mxu0 %v1327
    %1879 = vmatpush2.bf16.msra.mxu0 %v1326
    %1880 = vmatprep.subr.bf16.mxu0 %v1325
    %1881 = vmatpush2.bf16.msra.mxu0 %v1324
    %1882 = vmatprep.subr.bf16.mxu0 %v1323
    %1883 = vmatpush2.bf16.msra.mxu0 %v1322
    %1884 = vmatprep.subr.bf16.mxu0 %v1321
    %1885 = vmatpush2.bf16.msra.mxu0 %v1320
    %1886 = vmatprep.subr.bf16.mxu0 %v1319
    %1887 = vmatpush2.bf16.msra.mxu0 %v1318
    %1888 = vmatprep.subr.bf16.mxu0 %v1317
    %1889 = vmatpush2.bf16.msra.mxu0 %v1316
    %1890 = vmatprep.subr.bf16.mxu0 %v1315
    %1891 = vmatpush2.bf16.msra.mxu0 %v1314
    %1892 = vmatprep.subr.bf16.mxu0 %v1313
    %1893 = vmatpush2.bf16.msra.mxu0 %v1312
    %1894 = vmatprep.mubr.bf16.mxu0 %v65
    %1895 = vmatmul.mubr.bf16.gmra.mxu0 %v64
    %v1896 = vpop.f32.mrf.mxu0
    %v1897 = vadd.f32 %v1856, %v1896
    %v1898 = vpop.f32.mrf.mxu0
    %v1899 = vadd.f32 %v1858, %v1898
    %v1900 = vpop.f32.mrf.mxu0
    %v1901 = vpop.f32.mrf.mxu0
    %1902 = vdwg.mxu0
    %1903 = vmatprep.subr.bf16.mxu0 %v1343
    %1904 = vmatpush1.bf16.msra.mxu0 %v1342
    %1905 = vmatprep.subr.bf16.mxu0 %v1341
    %1906 = vmatpush1.bf16.msra.mxu0 %v1340
    %1907 = vmatprep.subr.bf16.mxu0 %v1339
    %1908 = vmatpush1.bf16.msra.mxu0 %v1338
    %1909 = vmatprep.subr.bf16.mxu0 %v1337
    %1910 = vmatpush1.bf16.msra.mxu0 %v1336
    %1911 = vmatprep.subr.bf16.mxu0 %v1335
    %1912 = vmatpush1.bf16.msra.mxu0 %v1334
    %1913 = vmatprep.subr.bf16.mxu0 %v1333
    %1914 = vmatpush1.bf16.msra.mxu0 %v1332
    %1915 = vmatprep.subr.bf16.mxu0 %v1331
    %1916 = vmatpush1.bf16.msra.mxu0 %v1330
    %1917 = vmatprep.subr.bf16.mxu0 %v1329
    %1918 = vmatpush1.bf16.msra.mxu0 %v1328
    %1919 = vmatprep.subr.bf16.mxu0 %v1359
    %1920 = vmatpush2.bf16.msra.mxu0 %v1358
    %1921 = vmatprep.subr.bf16.mxu0 %v1357
    %1922 = vmatpush2.bf16.msra.mxu0 %v1356
    %1923 = vmatprep.subr.bf16.mxu0 %v1355
    %1924 = vmatpush2.bf16.msra.mxu0 %v1354
    %1925 = vmatprep.subr.bf16.mxu0 %v1353
    %1926 = vmatpush2.bf16.msra.mxu0 %v1352
    %1927 = vmatprep.subr.bf16.mxu0 %v1351
    %1928 = vmatpush2.bf16.msra.mxu0 %v1350
    %1929 = vmatprep.subr.bf16.mxu0 %v1349
    %1930 = vmatpush2.bf16.msra.mxu0 %v1348
    %1931 = vmatprep.subr.bf16.mxu0 %v1347
    %1932 = vmatpush2.bf16.msra.mxu0 %v1346
    %1933 = vmatprep.subr.bf16.mxu0 %v1345
    %1934 = vmatpush2.bf16.msra.mxu0 %v1344
    %1935 = vmatprep.mubr.bf16.mxu0 %v67
    %1936 = vmatmul.mubr.bf16.gmra.mxu0 %v66
    %v1937 = vpop.f32.mrf.mxu0
    %v1938 = vadd.f32 %v1897, %v1937
    %v1939 = vpop.f32.mrf.mxu0
    %v1940 = vadd.f32 %v1899, %v1939
    %v1941 = vpop.f32.mrf.mxu0
    %v1942 = vpop.f32.mrf.mxu0
    %1943 = vdwg.mxu0
    %v1944 = vtanh.pop %v1938
    %v1945 = vtanh.pop %v1940
    %v1946 = vpack.c.bf16 %v1944, %v1944
    %v1947 = vpack.c.bf16 %v1945, %v1945
    %v1948 = vld [vmem:[%s3] sm:$0xf]
    %v1949 = vld [vmem:[%s3 + $0x4] sm:$0xf]
    %v1950 = vld [vmem:[%s3 + $0x8] sm:$0xf]
    %v1951 = vld [vmem:[%s3 + $0xc] sm:$0xf]
    %v1952 = vld [vmem:[%s3 + $0x10] sm:$0xf]
    %v1953 = vld [vmem:[%s3 + $0x14] sm:$0xf]
    %v1954 = vld [vmem:[%s3 + $0x18] sm:$0xf]
    %v1955 = vld [vmem:[%s3 + $0x1c] sm:$0xf]
    %v1956 = vld [vmem:[%s3 + $0x20] sm:$0xf]
    %v1957 = vld [vmem:[%s3 + $0x24] sm:$0xf]
    %v1958 = vld [vmem:[%s3 + $0x28] sm:$0xf]
    %v1959 = vld [vmem:[%s3 + $0x2c] sm:$0xf]
    %v1960 = vld [vmem:[%s3 + $0x30] sm:$0xf]
    %v1961 = vld [vmem:[%s3 + $0x34] sm:$0xf]
    %v1962 = vld [vmem:[%s3 + $0x38] sm:$0xf]
    %v1963 = vld [vmem:[%s3 + $0x3c] sm:$0xf]
    %v1964 = vld [vmem:[%s3 + $0x40] sm:$0xf]
    %v1965 = vld [vmem:[%s3 + $0x44] sm:$0xf]
    %v1966 = vld [vmem:[%s3 + $0x48] sm:$0xf]
    %v1967 = vld [vmem:[%s3 + $0x4c] sm:$0xf]
    %v1968 = vld [vmem:[%s3 + $0x50] sm:$0xf]
    %v1969 = vld [vmem:[%s3 + $0x54] sm:$0xf]
    %v1970 = vld [vmem:[%s3 + $0x58] sm:$0xf]
    %v1971 = vld [vmem:[%s3 + $0x5c] sm:$0xf]
    %v1972 = vld [vmem:[%s3 + $0x60] sm:$0xf]
    %v1973 = vld [vmem:[%s3 + $0x64] sm:$0xf]
    %v1974 = vld [vmem:[%s3 + $0x68] sm:$0xf]
    %v1975 = vld [vmem:[%s3 + $0x6c] sm:$0xf]
    %v1976 = vld [vmem:[%s3 + $0x70] sm:$0xf]
    %v1977 = vld [vmem:[%s3 + $0x74] sm:$0xf]
    %v1978 = vld [vmem:[%s3 + $0x78] sm:$0xf]
    %v1979 = vld [vmem:[%s3 + $0x7c] sm:$0xf]
    %v1980 = vld [vmem:[%s4] sm:$0x1]
    %v1982 = vlaneseq
    %v1983 = vshrl.u32 %v1982, 7
    %v1984 = vsub.s32 0, %v1983
    %v1985 = vrot.slane %v1980, %v1984
    %v2019 = vunpack.c.l.b16 %v1948
    %v2020 = vunpack.c.l.b16 %v1949
    %v2021 = vunpack.c.l.b16 %v1950
    %v2022 = vunpack.c.l.b16 %v1951
    %v2023 = vunpack.c.l.b16 %v1952
    %v2024 = vunpack.c.l.b16 %v1953
    %v2025 = vunpack.c.l.b16 %v1954
    %v2026 = vunpack.c.l.b16 %v1955
    %v2027 = vunpack.c.l.b16 %v1956
    %v2028 = vunpack.c.l.b16 %v1957
    %v2029 = vunpack.c.l.b16 %v1958
    %v2030 = vunpack.c.l.b16 %v1959
    %v2031 = vunpack.c.l.b16 %v1960
    %v2032 = vunpack.c.l.b16 %v1961
    %v2033 = vunpack.c.l.b16 %v1962
    %v2034 = vunpack.c.l.b16 %v1963
    %v2035 = vunpack.c.l.b16 %v1964
    %v2036 = vunpack.c.l.b16 %v1965
    %v2037 = vunpack.c.l.b16 %v1966
    %v2038 = vunpack.c.l.b16 %v1967
    %v2039 = vunpack.c.l.b16 %v1968
    %v2040 = vunpack.c.l.b16 %v1969
    %v2041 = vunpack.c.l.b16 %v1970
    %v2042 = vunpack.c.l.b16 %v1971
    %v2043 = vunpack.c.l.b16 %v1972
    %v2044 = vunpack.c.l.b16 %v1973
    %v2045 = vunpack.c.l.b16 %v1974
    %v2046 = vunpack.c.l.b16 %v1975
    %v2047 = vunpack.c.l.b16 %v1976
    %v2048 = vunpack.c.l.b16 %v1977
    %v2049 = vunpack.c.l.b16 %v1978
    %v2050 = vunpack.c.l.b16 %v1979
    %v2051 = vpack.c.b16 %v2020, %v2019
    %v2052 = vpack.c.b16 %v2022, %v2021
    %v2053 = vpack.c.b16 %v2024, %v2023
    %v2054 = vpack.c.b16 %v2026, %v2025
    %v2055 = vpack.c.b16 %v2028, %v2027
    %v2056 = vpack.c.b16 %v2030, %v2029
    %v2057 = vpack.c.b16 %v2032, %v2031
    %v2058 = vpack.c.b16 %v2034, %v2033
    %v2059 = vpack.c.b16 %v2036, %v2035
    %v2060 = vpack.c.b16 %v2038, %v2037
    %v2061 = vpack.c.b16 %v2040, %v2039
    %v2062 = vpack.c.b16 %v2042, %v2041
    %v2063 = vpack.c.b16 %v2044, %v2043
    %v2064 = vpack.c.b16 %v2046, %v2045
    %v2065 = vpack.c.b16 %v2048, %v2047
    %v2066 = vpack.c.b16 %v2050, %v2049
    %2083 = vmatprep.subr.bf16.mxu0 0
    %2084 = vmatpush1.bf16.msra.mxu0 %v2058
    %2085 = vmatprep.subr.bf16.mxu0 0
    %2086 = vmatpush1.bf16.msra.mxu0 %v2057
    %2087 = vmatprep.subr.bf16.mxu0 0
    %2088 = vmatpush1.bf16.msra.mxu0 %v2056
    %2089 = vmatprep.subr.bf16.mxu0 0
    %2090 = vmatpush1.bf16.msra.mxu0 %v2055
    %2091 = vmatprep.subr.bf16.mxu0 0
    %2092 = vmatpush1.bf16.msra.mxu0 %v2054
    %2093 = vmatprep.subr.bf16.mxu0 0
    %2094 = vmatpush1.bf16.msra.mxu0 %v2053
    %2095 = vmatprep.subr.bf16.mxu0 0
    %2096 = vmatpush1.bf16.msra.mxu0 %v2052
    %2097 = vmatprep.subr.bf16.mxu0 0
    %2098 = vmatpush1.bf16.msra.mxu0 %v2051
    %2099 = vmatprep.subr.bf16.mxu0 0
    %2100 = vmatpush2.bf16.msra.mxu0 %v2066
    %2101 = vmatprep.subr.bf16.mxu0 0
    %2102 = vmatpush2.bf16.msra.mxu0 %v2065
    %2103 = vmatprep.subr.bf16.mxu0 0
    %2104 = vmatpush2.bf16.msra.mxu0 %v2064
    %2105 = vmatprep.subr.bf16.mxu0 0
    %2106 = vmatpush2.bf16.msra.mxu0 %v2063
    %2107 = vmatprep.subr.bf16.mxu0 0
    %2108 = vmatpush2.bf16.msra.mxu0 %v2062
    %2109 = vmatprep.subr.bf16.mxu0 0
    %2110 = vmatpush2.bf16.msra.mxu0 %v2061
    %2111 = vmatprep.subr.bf16.mxu0 0
    %2112 = vmatpush2.bf16.msra.mxu0 %v2060
    %2113 = vmatprep.subr.bf16.mxu0 0
    %2114 = vmatpush2.bf16.msra.mxu0 %v2059
    %2115 = vmatprep.mubr.bf16.mxu0 %v1947
    %2116 = vmatmul.mubr.bf16.gmra.mxu0 %v1946
    %v2117 = vpop.f32.mrf.mxu0
    %v2118 = vadd.f32 %v1985, %v2117
    %v2119 = vpop.f32.mrf.mxu0
    %v2120 = vpop.f32.mrf.mxu0
    %v2121 = vpop.f32.mrf.mxu0
    %2122 = vdwg.mxu0
    %2123 = vmax.xlane.f32.xlu0 %v2118
    %v2124 = vpop.xlane.xlu0 %2123
    %v2125 = vsub.f32 %v2118, %v2124
    %v2126 = vmul.f32 %v2125, 1.442695
    %v2127 = vpow.pop %v2126
    %2128 = vadd.xlane.f32.xlu0 %v2127
    %v2129 = vpop.xlane.xlu0 %2128
    %v2130 = vlog2.pop %v2129
    %v2131 = vmul.f32 %v2130, 0.6931472
    %v2132 = vsub.f32 %v2125, %v2131
    %vm2133 = vcmask 818176
    %2134 = vst.msk [vmem:[#allocation5] sm:$0xff] %vm2133, %v2132
    // Predicated region
    $region26: #{test_model_forward.1} parent=1 // pred_check
      _
    $region27: #{test_model_forward.1} parent=1 // pred_check_branch
      %2136 = sbr.rel (0) target = $region29
    $region28: #{test_model_forward.1} parent=1 // pred_region
      %s2138 = ssub.s32 128, 128
      %2139 = vsyncadd [#allocation4], %s2138
      %s2141 = sshll.u32 [#allocation5], 4
      %s2142 = int_to_ptr.vmem [resolvable:$true] %s2141
      %2144 = dma.vmem_to_hbm [thread:$0]  %s2142, 128, %s5, [#allocation4]
    $region29: #{test_model_forward.1} parent=1 // pred_fallthru
      _
    // Predicated region
    $region30: #{test_model_forward.1} parent=1 // pred_check
      _
    $region31: #{test_model_forward.1} parent=1 // pred_check_branch
      %2146 = sbr.rel (0) target = $region33
    $region32: #{test_model_forward.1} parent=1 // pred_region
      %2147 = dma.done [#allocation4], 128
    $region33: #{test_model_forward.1} parent=1 // pred_fallthru
      _
    %2148 = vsyncpa [#allocation3], 1
    %2149 = vsyncpa [#allocation4], 1

</llo_original>
